<compile_context>
chip_gen: v7x
topology: tpu7x:2x2x1
jax: 0.10.0
libtpu: 0.0.40
codegen_flags: <defaults>
</compile_context>

<pallas_src>
import jax
import jax.numpy as jnp
from jax.experimental import pallas as pl
from jax.experimental.pallas import tpu as pltpu


# ---------------------------------------------------------------------------
# Fused kernel helpers / body
# ---------------------------------------------------------------------------
def _conv_bn_relu_pool(a, w_flat, scale, bias):
    """Conv1d(k=3, padding=1) + folded BN + ReLU + MaxPool1d(2), all in vregs.

    a:      (B, L, Cin)   activation value (f32)
    w_flat: (3*Cin, Cout) conv taps; row k*Cin + c  ==  w[k, c, :]
    scale, bias: (1, Cout) (conv bias + BN running stats folded)
    returns: (B, L//2, Cout)
    """
    B, L, Cin = a.shape
    Cout = w_flat.shape[1]

    # Shifted taps (x[l-1], x[l], x[l+1]) with zero edges, built in-vreg from a
    # halo row + sublane concat; no padding scratch, no VMEM round trip.
    # TODO(synk): pltpu.roll(a, +/-1, axis=1) + edge mask is an equivalent
    # XLU-slot formulation if the concat lowering ever shows up hot.
    zrow = jnp.zeros((B, 1, Cin), jnp.float32)
    prev = jnp.concatenate([zrow, a[:, :L - 1, :]], axis=1)    # x[l-1]
    nxt = jnp.concatenate([a[:, 1:, :], zrow], axis=1)         # x[l+1]

    # im2col: one MXU contraction with K = 3*Cin (single push per conv block).
    cols = jnp.concatenate([prev, a, nxt], axis=-1).reshape(B * L, 3 * Cin)
    y = jnp.dot(cols, w_flat, preferred_element_type=jnp.float32)  # (B*L, Cout)

    y = jnp.maximum(y * scale + bias, 0.0)                     # folded BN + ReLU
    # MaxPool1d(kernel_size=2): pairwise max along L.
    return y.reshape(B, L // 2, 2, Cout).max(axis=2)


def cnn_lstm_kernel(x_ref, w1_ref, s1_ref, b1_ref, w2_ref, s2_ref, b2_ref,
                    wih_ref, whh_ref, bl_ref, wfc_ref, bfc_ref, o_ref):
    # x_ref:   (B, L0, 1)
    # w*_ref:  (3*Cin, Cout)   s*/b*_ref: (1, Cout)
    # wih_ref: (C2, 4H)  whh_ref: (H, 4H)  bl_ref: (1, 4H)  (b_ih + b_hh)
    # wfc_ref: (H, NC)   bfc_ref: (1, NC)
    # o_ref:   (B, NC)
    H = whh_ref.shape[0]

    x = x_ref[...].astype(jnp.float32)

    # CNN stack (each block halves L).
    a1 = _conv_bn_relu_pool(x, w1_ref[...], s1_ref[...], b1_ref[...])   # (B,L0/2,C1)
    a2 = _conv_bn_relu_pool(a1, w2_ref[...], s2_ref[...], b2_ref[...])  # (B,T,C2)

    B, T, C2 = a2.shape

    # LSTM input projection (and bias) hoisted out of the recurrence:
    # one explicit 2-D matmul over all B*T rows.
    gx = (jnp.dot(a2.reshape(B * T, C2), wih_ref[...],
                  preferred_element_type=jnp.float32)
          + bl_ref[...]).reshape(B, T, 4 * H)                           # (B,T,4H)

    whh = whh_ref[...]                       # hoisted: load recurrent weights once
    h = jnp.zeros((B, H), jnp.float32)
    c = jnp.zeros((B, H), jnp.float32)
    for t in range(T):                       # T == 4: static unroll, h/c in vregs
        gates = gx[:, t, :] + jnp.dot(h, whh,
                                      preferred_element_type=jnp.float32)
        sg = jax.nn.sigmoid(gates)           # one full-width EUP pass (i, f, o)
        g = jnp.tanh(gates[:, 2 * H:3 * H])  # tanh only on the g slice
        i = sg[:, 0 * H:1 * H]               # PyTorch gate order: i, f, g, o
        f = sg[:, 1 * H:2 * H]
        o = sg[:, 3 * H:4 * H]
        c = f * c + i * g
        h = o * jnp.tanh(c)
    # TODO(synk): for large T, switch to lax.fori_loop with chunked gx instead
    # of the full unroll / whole-sequence gx (vreg/VMEM pressure, esp. v7x).

    # out[:, -1, :] -> dropout (identity in eval) -> fc
    logits = jnp.dot(h, wfc_ref[...],
                     preferred_element_type=jnp.float32) + bfc_ref[...]
    # TODO(synk): if NC or B grow, pad the store to a 128-lane-dense block.
    o_ref[...] = logits.astype(o_ref.dtype)


# ---------------------------------------------------------------------------
# Wrapper: single fused pallas_call
# ---------------------------------------------------------------------------
def cnn_lstm_forward(x_ncl, params):
    # x_ncl: (B, 1, L0) exactly like the PyTorch forward input.
    B, _, L0 = x_ncl.shape
    (w1, s1, b1), (w2, s2, b2) = params["conv"]
    C1 = w1.shape[2]
    C2 = w2.shape[2]
    H = params["whh_t"].shape[0]
    NC = params["wfc_t"].shape[1]

    x = x_ncl.reshape(B, L0, 1)   # (B,1,L) -> (B,L,1): free metadata reshape

    vmem = pl.BlockSpec(memory_space=pltpu.MemorySpace.VMEM)
    # TODO(synk): at these toy shapes everything fits in VMEM on a single core;
    # if B/L/C/H scale up, add a grid over B ("parallel", for v7x's 2 TCs),
    # (8,128)-aligned tiles sized against v7x's 64 MiB VMEM (vmem_limit_bytes),
    # and cast matmul inputs to bf16 on v6e/v7x.
    return pl.pallas_call(
        cnn_lstm_kernel,
        out_shape=jax.ShapeDtypeStruct((B, NC), jnp.float32),
        in_specs=[vmem] * 12,
        out_specs=vmem,
    )(x,
      w1.reshape(3 * 1, C1), s1.reshape(1, C1), b1.reshape(1, C1),
      w2.reshape(3 * C1, C2), s2.reshape(1, C2), b2.reshape(1, C2),
      params["wih_t"], params["whh_t"], params["b_lstm"].reshape(1, 4 * H),
      params["wfc_t"], params["bfc"].reshape(1, NC))


# ---------------------------------------------------------------------------
# Parameter construction (deterministic, synthetic), eval-mode BN folding.
# NOTE: when porting real PyTorch weights, reproduce the (Cout,Cin,3) ->
# (3,Cin,Cout) permute and the W.T transposes below, or results will be wrong.
# ---------------------------------------------------------------------------
def init_params(key, out_channels, lstm_hidden, num_classes):
    eps = 1e-5
    convs = []
    cin = 1
    for oc in out_channels:
        key, k1, k2, k3, k4 = jax.random.split(key, 5)
        w = 0.1 * jax.random.normal(k1, (3, cin, oc), jnp.float32)
        b_conv = 0.1 * jax.random.normal(k2, (oc,), jnp.float32)
        gamma = 1.0 + 0.1 * jax.random.normal(k3, (oc,), jnp.float32)
        beta = 0.1 * jax.random.normal(k4, (oc,), jnp.float32)
        running_mean = jnp.zeros((oc,), jnp.float32)
        running_var = jnp.ones((oc,), jnp.float32)
        scale = gamma / jnp.sqrt(running_var + eps)
        bias = (b_conv - running_mean) * scale + beta
        convs.append((w, scale, bias))
        cin = oc

    H = lstm_hidden
    key, k1, k2, k3, k4, k5, k6 = jax.random.split(key, 7)
    wih = 0.1 * jax.random.normal(k1, (4 * H, cin), jnp.float32)   # (4H, in)
    whh = 0.1 * jax.random.normal(k2, (4 * H, H), jnp.float32)     # (4H, H)
    bih = 0.1 * jax.random.normal(k3, (4 * H,), jnp.float32)
    bhh = 0.1 * jax.random.normal(k4, (4 * H,), jnp.float32)
    wfc = 0.1 * jax.random.normal(k5, (num_classes, H), jnp.float32)
    bfc = 0.1 * jax.random.normal(k6, (num_classes,), jnp.float32)
    return {
        "conv": convs,
        "wih_t": wih.T, "whh_t": whh.T, "b_lstm": bih + bhh,
        "wfc_t": wfc.T, "bfc": bfc,
    }


# ---------------------------------------------------------------------------
# Pure-JAX reference (independent pad-based conv formulation) for validation.
# ---------------------------------------------------------------------------
def reference_forward(x_ncl, params):
    (w1, s1, b1), (w2, s2, b2) = params["conv"]

    def conv_block(a, w, s, b):
        B, L, _ = a.shape
        pad = jnp.pad(a, ((0, 0), (1, 1), (0, 0)))
        y = sum(jnp.einsum("blc,co->blo", pad[:, k:k + L, :], w[k])
                for k in range(3))
        y = jnp.maximum(y * s.reshape(1, 1, -1) + b.reshape(1, 1, -1), 0.0)
        return y.reshape(B, L // 2, 2, -1).max(axis=2)

    B = x_ncl.shape[0]
    a = conv_block(x_ncl.reshape(B, -1, 1), w1, s1, b1)
    a = conv_block(a, w2, s2, b2)

    H = params["whh_t"].shape[0]
    T = a.shape[1]
    h = jnp.zeros((B, H), jnp.float32)
    c = jnp.zeros((B, H), jnp.float32)
    for t in range(T):
        g = a[:, t, :] @ params["wih_t"] + h @ params["whh_t"] + params["b_lstm"]
        i = jax.nn.sigmoid(g[:, 0 * H:1 * H])
        f = jax.nn.sigmoid(g[:, 1 * H:2 * H])
        gg = jnp.tanh(g[:, 2 * H:3 * H])
        o = jax.nn.sigmoid(g[:, 3 * H:4 * H])
        c = f * c + i * gg
        h = o * jnp.tanh(c)
    return h @ params["wfc_t"] + params["bfc"].reshape(1, -1)


if __name__ == "__main__":
    out_channels = (8, 16)
    seq_length = 16
    num_classes = 5
    lstm_hidden = 32
    batch = 2

    key = jax.random.PRNGKey(0)
    kx, kp = jax.random.split(key)
    x = jax.random.normal(kx, (batch, 1, seq_length), jnp.float32)
    params = init_params(kp, out_channels, lstm_hidden, num_classes)

    logits = jax.jit(lambda xx: cnn_lstm_forward(xx, params))(x)
    logits = jax.block_until_ready(logits)

    assert logits.shape == (batch, num_classes), logits.shape
    assert bool(jnp.all(jnp.isfinite(logits)))

    with jax.default_matmul_precision("float32"):
        ref = reference_forward(x, params)
    assert bool(jnp.allclose(logits, ref, rtol=2e-2, atol=2e-2)), \
        float(jnp.max(jnp.abs(logits - ref)))

    print("KERNEL_OK")
</pallas_src>

<mosaic_0001>
module attributes {stable_mosaic.version = 11 : i64} {
  func.func @cnn_lstm_kernel(%arg0: memref<2x16x1xf32, #tpu.memory_space<vmem>>, %arg1: memref<3x8xf32, #tpu.memory_space<vmem>>, %arg2: memref<1x8xf32, #tpu.memory_space<vmem>>, %arg3: memref<1x8xf32, #tpu.memory_space<vmem>>, %arg4: memref<24x16xf32, #tpu.memory_space<vmem>>, %arg5: memref<1x16xf32, #tpu.memory_space<vmem>>, %arg6: memref<1x16xf32, #tpu.memory_space<vmem>>, %arg7: memref<16x128xf32, #tpu.memory_space<vmem>>, %arg8: memref<32x128xf32, #tpu.memory_space<vmem>>, %arg9: memref<1x128xf32, #tpu.memory_space<vmem>>, %arg10: memref<32x5xf32, #tpu.memory_space<vmem>>, %arg11: memref<1x5xf32, #tpu.memory_space<vmem>>, %arg12: memref<2x5xf32, #tpu.memory_space<vmem>>) attributes {dimension_semantics = [], scalar_prefetch = 0 : i64, scratch_operands = 0 : i64, tpu.core_type = #tpu.core_type<tc>} {
    %c0 = arith.constant 0 : index
    %c0_0 = arith.constant 0 : index
    %c0_1 = arith.constant 0 : index
    %0 = vector.load %arg0[%c0, %c0_0, %c0_1] : memref<2x16x1xf32, #tpu.memory_space<vmem>>, vector<2x16x1xf32>
    %c0_2 = arith.constant 0 : index
    %c0_3 = arith.constant 0 : index
    %1 = vector.load %arg1[%c0_2, %c0_3] : memref<3x8xf32, #tpu.memory_space<vmem>>, vector<3x8xf32>
    %c0_4 = arith.constant 0 : index
    %c0_5 = arith.constant 0 : index
    %2 = vector.load %arg2[%c0_4, %c0_5] : memref<1x8xf32, #tpu.memory_space<vmem>>, vector<1x8xf32>
    %c0_6 = arith.constant 0 : index
    %c0_7 = arith.constant 0 : index
    %3 = vector.load %arg3[%c0_6, %c0_7] : memref<1x8xf32, #tpu.memory_space<vmem>>, vector<1x8xf32>
    %cst = arith.constant 0.000000e+00 : f32
    %4 = vector.broadcast %cst : f32 to vector<2x1x1xf32>
    %5 = vector.extract_strided_slice %0 {offsets = [0, 0, 0], sizes = [2, 15, 1], strides = [1, 1, 1]} : vector<2x16x1xf32> to vector<2x15x1xf32>
    %6 = tpu.concatenate %4, %5 in 1 : vector<2x1x1xf32>, vector<2x15x1xf32> -> vector<2x16x1xf32>
    %7 = vector.extract_strided_slice %0 {offsets = [0, 1, 0], sizes = [2, 15, 1], strides = [1, 1, 1]} : vector<2x16x1xf32> to vector<2x15x1xf32>
    %8 = tpu.concatenate %7, %4 in 1 : vector<2x15x1xf32>, vector<2x1x1xf32> -> vector<2x16x1xf32>
    %9 = tpu.concatenate %6, %0, %8 in 2 : vector<2x16x1xf32>, vector<2x16x1xf32>, vector<2x16x1xf32> -> vector<2x16x3xf32>
    %10 = vector.shape_cast %9 : vector<2x16x3xf32> to vector<32x3xf32>
    %cst_8 = arith.constant dense<0.000000e+00> : vector<32x8xf32>
    %11 = tpu.matmul %10, %1, %cst_8 {dimension_numbers = #tpu.dot_dimension_numbers<[1], [0], [0], [1], [0, 0, 1, 1], [], []>} : vector<32x3xf32>, vector<3x8xf32>, vector<32x8xf32> -> vector<32x8xf32>
    %12 = vector.broadcast %2 : vector<1x8xf32> to vector<32x8xf32>
    %13 = arith.mulf %11, %12 : vector<32x8xf32>
    %14 = vector.broadcast %3 : vector<1x8xf32> to vector<32x8xf32>
    %15 = arith.addf %13, %14 : vector<32x8xf32>
    %cst_9 = arith.constant 0.000000e+00 : f32
    %16 = vector.broadcast %cst_9 : f32 to vector<32x8xf32>
    %17 = arith.maximumf %15, %16 : vector<32x8xf32>
    %18 = vector.shape_cast %17 : vector<32x8xf32> to vector<2x8x2x8xf32>
    %cst_10 = arith.constant dense<0xFF800000> : vector<2x8x8xf32>
    %19 = vector.multi_reduction <maximumf>, %18, %cst_10 [2] : vector<2x8x2x8xf32> to vector<2x8x8xf32>
    %c0_11 = arith.constant 0 : index
    %c0_12 = arith.constant 0 : index
    %20 = vector.load %arg4[%c0_11, %c0_12] : memref<24x16xf32, #tpu.memory_space<vmem>>, vector<24x16xf32>
    %c0_13 = arith.constant 0 : index
    %c0_14 = arith.constant 0 : index
    %21 = vector.load %arg5[%c0_13, %c0_14] : memref<1x16xf32, #tpu.memory_space<vmem>>, vector<1x16xf32>
    %c0_15 = arith.constant 0 : index
    %c0_16 = arith.constant 0 : index
    %22 = vector.load %arg6[%c0_15, %c0_16] : memref<1x16xf32, #tpu.memory_space<vmem>>, vector<1x16xf32>
    %cst_17 = arith.constant 0.000000e+00 : f32
    %23 = vector.broadcast %cst_17 : f32 to vector<2x1x8xf32>
    %24 = vector.extract_strided_slice %19 {offsets = [0, 0, 0], sizes = [2, 7, 8], strides = [1, 1, 1]} : vector<2x8x8xf32> to vector<2x7x8xf32>
    %25 = tpu.concatenate %23, %24 in 1 : vector<2x1x8xf32>, vector<2x7x8xf32> -> vector<2x8x8xf32>
    %26 = vector.extract_strided_slice %19 {offsets = [0, 1, 0], sizes = [2, 7, 8], strides = [1, 1, 1]} : vector<2x8x8xf32> to vector<2x7x8xf32>
    %27 = tpu.concatenate %26, %23 in 1 : vector<2x7x8xf32>, vector<2x1x8xf32> -> vector<2x8x8xf32>
    %28 = tpu.concatenate %25, %19, %27 in 2 : vector<2x8x8xf32>, vector<2x8x8xf32>, vector<2x8x8xf32> -> vector<2x8x24xf32>
    %29 = vector.shape_cast %28 : vector<2x8x24xf32> to vector<16x24xf32>
    %cst_18 = arith.constant dense<0.000000e+00> : vector<16x16xf32>
    %30 = tpu.matmul %29, %20, %cst_18 {dimension_numbers = #tpu.dot_dimension_numbers<[1], [0], [0], [1], [0, 0, 1, 1], [], []>} : vector<16x24xf32>, vector<24x16xf32>, vector<16x16xf32> -> vector<16x16xf32>
    %31 = vector.broadcast %21 : vector<1x16xf32> to vector<16x16xf32>
    %32 = arith.mulf %30, %31 : vector<16x16xf32>
    %33 = vector.broadcast %22 : vector<1x16xf32> to vector<16x16xf32>
    %34 = arith.addf %32, %33 : vector<16x16xf32>
    %cst_19 = arith.constant 0.000000e+00 : f32
    %35 = vector.broadcast %cst_19 : f32 to vector<16x16xf32>
    %36 = arith.maximumf %34, %35 : vector<16x16xf32>
    %37 = vector.shape_cast %36 : vector<16x16xf32> to vector<2x4x2x16xf32>
    %cst_20 = arith.constant dense<0xFF800000> : vector<2x4x16xf32>
    %38 = vector.multi_reduction <maximumf>, %37, %cst_20 [2] : vector<2x4x2x16xf32> to vector<2x4x16xf32>
    %39 = vector.shape_cast %38 : vector<2x4x16xf32> to vector<8x16xf32>
    %c0_21 = arith.constant 0 : index
    %c0_22 = arith.constant 0 : index
    %40 = vector.load %arg7[%c0_21, %c0_22] : memref<16x128xf32, #tpu.memory_space<vmem>>, vector<16x128xf32>
    %cst_23 = arith.constant dense<0.000000e+00> : vector<8x128xf32>
    %41 = tpu.matmul %39, %40, %cst_23 {dimension_numbers = #tpu.dot_dimension_numbers<[1], [0], [0], [1], [0, 0, 1, 1], [], []>} : vector<8x16xf32>, vector<16x128xf32>, vector<8x128xf32> -> vector<8x128xf32>
    %c0_24 = arith.constant 0 : index
    %c0_25 = arith.constant 0 : index
    %42 = vector.load %arg9[%c0_24, %c0_25] : memref<1x128xf32, #tpu.memory_space<vmem>>, vector<1x128xf32>
    %43 = vector.broadcast %42 : vector<1x128xf32> to vector<8x128xf32>
    %44 = arith.addf %41, %43 : vector<8x128xf32>
    %45 = vector.shape_cast %44 : vector<8x128xf32> to vector<2x4x128xf32>
    %c0_26 = arith.constant 0 : index
    %c0_27 = arith.constant 0 : index
    %46 = vector.load %arg8[%c0_26, %c0_27] : memref<32x128xf32, #tpu.memory_space<vmem>>, vector<32x128xf32>
    %cst_28 = arith.constant 0.000000e+00 : f32
    %47 = vector.broadcast %cst_28 : f32 to vector<2x32xf32>
    %cst_29 = arith.constant 0.000000e+00 : f32
    %48 = vector.broadcast %cst_29 : f32 to vector<2x32xf32>
    %49 = vector.extract_strided_slice %45 {offsets = [0, 0, 0], sizes = [2, 1, 128], strides = [1, 1, 1]} : vector<2x4x128xf32> to vector<2x1x128xf32>
    %50 = vector.shape_cast %49 : vector<2x1x128xf32> to vector<2x128xf32>
    %cst_30 = arith.constant dense<0.000000e+00> : vector<2x128xf32>
    %51 = tpu.matmul %47, %46, %cst_30 {dimension_numbers = #tpu.dot_dimension_numbers<[1], [0], [0], [1], [0, 0, 1, 1], [], []>} : vector<2x32xf32>, vector<32x128xf32>, vector<2x128xf32> -> vector<2x128xf32>
    %52 = arith.addf %50, %51 : vector<2x128xf32>
    %53 = arith.negf %52 : vector<2x128xf32>
    %54 = math.exp %53 : vector<2x128xf32>
    %cst_31 = arith.constant 1.000000e+00 : f32
    %55 = vector.broadcast %cst_31 : f32 to vector<2x128xf32>
    %56 = arith.addf %55, %54 : vector<2x128xf32>
    %57 = arith.divf %55, %56 : vector<2x128xf32>
    %58 = vector.extract_strided_slice %52 {offsets = [0, 64], sizes = [2, 32], strides = [1, 1]} : vector<2x128xf32> to vector<2x32xf32>
    %59 = math.tanh %58 : vector<2x32xf32>
    %60 = vector.extract_strided_slice %57 {offsets = [0, 0], sizes = [2, 32], strides = [1, 1]} : vector<2x128xf32> to vector<2x32xf32>
    %61 = vector.extract_strided_slice %57 {offsets = [0, 32], sizes = [2, 32], strides = [1, 1]} : vector<2x128xf32> to vector<2x32xf32>
    %62 = vector.extract_strided_slice %57 {offsets = [0, 96], sizes = [2, 32], strides = [1, 1]} : vector<2x128xf32> to vector<2x32xf32>
    %63 = arith.mulf %61, %48 : vector<2x32xf32>
    %64 = arith.mulf %60, %59 : vector<2x32xf32>
    %65 = arith.addf %63, %64 : vector<2x32xf32>
    %66 = math.tanh %65 : vector<2x32xf32>
    %67 = arith.mulf %62, %66 : vector<2x32xf32>
    %68 = vector.extract_strided_slice %45 {offsets = [0, 1, 0], sizes = [2, 1, 128], strides = [1, 1, 1]} : vector<2x4x128xf32> to vector<2x1x128xf32>
    %69 = vector.shape_cast %68 : vector<2x1x128xf32> to vector<2x128xf32>
    %cst_32 = arith.constant dense<0.000000e+00> : vector<2x128xf32>
    %70 = tpu.matmul %67, %46, %cst_32 {dimension_numbers = #tpu.dot_dimension_numbers<[1], [0], [0], [1], [0, 0, 1, 1], [], []>} : vector<2x32xf32>, vector<32x128xf32>, vector<2x128xf32> -> vector<2x128xf32>
    %71 = arith.addf %69, %70 : vector<2x128xf32>
    %72 = arith.negf %71 : vector<2x128xf32>
    %73 = math.exp %72 : vector<2x128xf32>
    %cst_33 = arith.constant 1.000000e+00 : f32
    %74 = vector.broadcast %cst_33 : f32 to vector<2x128xf32>
    %75 = arith.addf %74, %73 : vector<2x128xf32>
    %76 = arith.divf %74, %75 : vector<2x128xf32>
    %77 = vector.extract_strided_slice %71 {offsets = [0, 64], sizes = [2, 32], strides = [1, 1]} : vector<2x128xf32> to vector<2x32xf32>
    %78 = math.tanh %77 : vector<2x32xf32>
    %79 = vector.extract_strided_slice %76 {offsets = [0, 0], sizes = [2, 32], strides = [1, 1]} : vector<2x128xf32> to vector<2x32xf32>
    %80 = vector.extract_strided_slice %76 {offsets = [0, 32], sizes = [2, 32], strides = [1, 1]} : vector<2x128xf32> to vector<2x32xf32>
    %81 = vector.extract_strided_slice %76 {offsets = [0, 96], sizes = [2, 32], strides = [1, 1]} : vector<2x128xf32> to vector<2x32xf32>
    %82 = arith.mulf %80, %65 : vector<2x32xf32>
    %83 = arith.mulf %79, %78 : vector<2x32xf32>
    %84 = arith.addf %82, %83 : vector<2x32xf32>
    %85 = math.tanh %84 : vector<2x32xf32>
    %86 = arith.mulf %81, %85 : vector<2x32xf32>
    %87 = vector.extract_strided_slice %45 {offsets = [0, 2, 0], sizes = [2, 1, 128], strides = [1, 1, 1]} : vector<2x4x128xf32> to vector<2x1x128xf32>
    %88 = vector.shape_cast %87 : vector<2x1x128xf32> to vector<2x128xf32>
    %cst_34 = arith.constant dense<0.000000e+00> : vector<2x128xf32>
    %89 = tpu.matmul %86, %46, %cst_34 {dimension_numbers = #tpu.dot_dimension_numbers<[1], [0], [0], [1], [0, 0, 1, 1], [], []>} : vector<2x32xf32>, vector<32x128xf32>, vector<2x128xf32> -> vector<2x128xf32>
    %90 = arith.addf %88, %89 : vector<2x128xf32>
    %91 = arith.negf %90 : vector<2x128xf32>
    %92 = math.exp %91 : vector<2x128xf32>
    %cst_35 = arith.constant 1.000000e+00 : f32
    %93 = vector.broadcast %cst_35 : f32 to vector<2x128xf32>
    %94 = arith.addf %93, %92 : vector<2x128xf32>
    %95 = arith.divf %93, %94 : vector<2x128xf32>
    %96 = vector.extract_strided_slice %90 {offsets = [0, 64], sizes = [2, 32], strides = [1, 1]} : vector<2x128xf32> to vector<2x32xf32>
    %97 = math.tanh %96 : vector<2x32xf32>
    %98 = vector.extract_strided_slice %95 {offsets = [0, 0], sizes = [2, 32], strides = [1, 1]} : vector<2x128xf32> to vector<2x32xf32>
    %99 = vector.extract_strided_slice %95 {offsets = [0, 32], sizes = [2, 32], strides = [1, 1]} : vector<2x128xf32> to vector<2x32xf32>
    %100 = vector.extract_strided_slice %95 {offsets = [0, 96], sizes = [2, 32], strides = [1, 1]} : vector<2x128xf32> to vector<2x32xf32>
    %101 = arith.mulf %99, %84 : vector<2x32xf32>
    %102 = arith.mulf %98, %97 : vector<2x32xf32>
    %103 = arith.addf %101, %102 : vector<2x32xf32>
    %104 = math.tanh %103 : vector<2x32xf32>
    %105 = arith.mulf %100, %104 : vector<2x32xf32>
    %106 = vector.extract_strided_slice %45 {offsets = [0, 3, 0], sizes = [2, 1, 128], strides = [1, 1, 1]} : vector<2x4x128xf32> to vector<2x1x128xf32>
    %107 = vector.shape_cast %106 : vector<2x1x128xf32> to vector<2x128xf32>
    %cst_36 = arith.constant dense<0.000000e+00> : vector<2x128xf32>
    %108 = tpu.matmul %105, %46, %cst_36 {dimension_numbers = #tpu.dot_dimension_numbers<[1], [0], [0], [1], [0, 0, 1, 1], [], []>} : vector<2x32xf32>, vector<32x128xf32>, vector<2x128xf32> -> vector<2x128xf32>
    %109 = arith.addf %107, %108 : vector<2x128xf32>
    %110 = arith.negf %109 : vector<2x128xf32>
    %111 = math.exp %110 : vector<2x128xf32>
    %cst_37 = arith.constant 1.000000e+00 : f32
    %112 = vector.broadcast %cst_37 : f32 to vector<2x128xf32>
    %113 = arith.addf %112, %111 : vector<2x128xf32>
    %114 = arith.divf %112, %113 : vector<2x128xf32>
    %115 = vector.extract_strided_slice %109 {offsets = [0, 64], sizes = [2, 32], strides = [1, 1]} : vector<2x128xf32> to vector<2x32xf32>
    %116 = math.tanh %115 : vector<2x32xf32>
    %117 = vector.extract_strided_slice %114 {offsets = [0, 0], sizes = [2, 32], strides = [1, 1]} : vector<2x128xf32> to vector<2x32xf32>
    %118 = vector.extract_strided_slice %114 {offsets = [0, 32], sizes = [2, 32], strides = [1, 1]} : vector<2x128xf32> to vector<2x32xf32>
    %119 = vector.extract_strided_slice %114 {offsets = [0, 96], sizes = [2, 32], strides = [1, 1]} : vector<2x128xf32> to vector<2x32xf32>
    %120 = arith.mulf %118, %103 : vector<2x32xf32>
    %121 = arith.mulf %117, %116 : vector<2x32xf32>
    %122 = arith.addf %120, %121 : vector<2x32xf32>
    %123 = math.tanh %122 : vector<2x32xf32>
    %124 = arith.mulf %119, %123 : vector<2x32xf32>
    %c0_38 = arith.constant 0 : index
    %c0_39 = arith.constant 0 : index
    %125 = vector.load %arg10[%c0_38, %c0_39] : memref<32x5xf32, #tpu.memory_space<vmem>>, vector<32x5xf32>
    %cst_40 = arith.constant dense<0.000000e+00> : vector<2x5xf32>
    %126 = tpu.matmul %124, %125, %cst_40 {dimension_numbers = #tpu.dot_dimension_numbers<[1], [0], [0], [1], [0, 0, 1, 1], [], []>} : vector<2x32xf32>, vector<32x5xf32>, vector<2x5xf32> -> vector<2x5xf32>
    %c0_41 = arith.constant 0 : index
    %c0_42 = arith.constant 0 : index
    %127 = vector.load %arg11[%c0_41, %c0_42] : memref<1x5xf32, #tpu.memory_space<vmem>>, vector<1x5xf32>
    %128 = vector.broadcast %127 : vector<1x5xf32> to vector<2x5xf32>
    %129 = arith.addf %126, %128 : vector<2x5xf32>
    %c0_43 = arith.constant 0 : index
    %c0_44 = arith.constant 0 : index
    %130 = vector.load %arg12[%c0_43, %c0_44] : memref<2x5xf32, #tpu.memory_space<vmem>>, vector<2x5xf32>
    tpu.vector_store %arg12[%c0_43, %c0_44], %129 {strides = array<i32>} : memref<2x5xf32, #tpu.memory_space<vmem>>, vector<2x5xf32>,
    return
  }
}

</mosaic_0001>

<llo_original>
// kernel: _lambda_.1
$region0: #{_lambda_.1}
  #allocation0 [shape = 'u32[]', space=smem, size = 0x4, offset = 0x4, fixed_abs, tag = 'smem constant byte address 0x4 - core index']
  #allocation1 [shape = 'u32[144,128]{1,0:T(1,128)}', space=vmem, size = 0x12000, scoped, tag = 'internal scratch']
  %s0 = inlined_call_operand.vmem [shape: f32[2,16,1], index: 0, kind: input, shape index: {}]
  %s1 = inlined_call_operand.vmem [shape: f32[3,8], index: 1, kind: input, shape index: {}]
  %s2 = inlined_call_operand.hbm [shape: f32[1,8], index: 2, kind: input, shape index: {}]
  %s3 = inlined_call_operand.hbm [shape: f32[1,8], index: 3, kind: input, shape index: {}]
  %s4 = inlined_call_operand.hbm [shape: f32[24,16], index: 4, kind: input, shape index: {}]
  %s5 = inlined_call_operand.hbm [shape: f32[1,16], index: 5, kind: input, shape index: {}]
  %s6 = inlined_call_operand.hbm [shape: f32[1,16], index: 6, kind: input, shape index: {}]
  %s7 = inlined_call_operand.hbm [shape: f32[16,128], index: 7, kind: input, shape index: {}]
  %s8 = inlined_call_operand.vmem [shape: f32[32,128], index: 8, kind: input, shape index: {}]
  %s9 = inlined_call_operand.hbm [shape: f32[1,128], index: 9, kind: input, shape index: {}]
  %s10 = inlined_call_operand.vmem [shape: f32[32,5], index: 10, kind: input, shape index: {}]
  %s11 = inlined_call_operand.hbm [shape: f32[1,5], index: 11, kind: input, shape index: {}]
  %s12 = inlined_call_operand.hbm [shape: f32[2,5], index: 12, kind: output, shape index: {}]
  %s13 = sld [smem:[#allocation0]]
  $region90: #{_lambda_.1} parent=0
    _
  %s15 = ssub.s32 1, %s13
  %s16 = scalar_select 0, %s15, %s13
  $region1: #{_lambda_.1} parent=0
    #allocation2 [shape = 'u8[512]{0}', space=vmem, size = 0x400, scoped, tag = 'input window, operand 2, single buffered']
    #allocation3 [shape = 's32[1]{0}', space=sflag, size = 0x4, scoped, tag = 'scoped memory for _lambda_.1']
    #allocation4 [shape = 's32[1]{0}', space=sflag, size = 0x4, scoped, tag = 'scoped memory for _lambda_.1']
    #allocation5 [shape = 'u8[512]{0}', space=vmem, size = 0x400, scoped, tag = 'input window, operand 3, single buffered']
    #allocation6 [shape = 's32[1]{0}', space=sflag, size = 0x4, scoped, tag = 'scoped memory for _lambda_.1']
    #allocation7 [shape = 'u8[12288]{0}', space=vmem, size = 0x3000, scoped, tag = 'input window, operand 4, single buffered']
    #allocation8 [shape = 'u8[512]{0}', space=vmem, size = 0x400, scoped, tag = 'input window, operand 5, single buffered']
    #allocation9 [shape = 's32[1]{0}', space=sflag, size = 0x4, scoped, tag = 'scoped memory for _lambda_.1']
    #allocation10 [shape = 'u8[512]{0}', space=vmem, size = 0x400, scoped, tag = 'input window, operand 6, single buffered']
    #allocation11 [shape = 'u8[8192]{0}', space=vmem, size = 0x2000, scoped, tag = 'input window, operand 7, single buffered']
    #allocation12 [shape = 's32[1]{0}', space=sflag, size = 0x4, scoped, tag = 'scoped memory for _lambda_.1']
    #allocation13 [shape = 'u8[512]{0}', space=vmem, size = 0x400, scoped, tag = 'input window, operand 9, single buffered']
    #allocation14 [shape = 'u8[512]{0}', space=vmem, size = 0x400, scoped, tag = 'input window, operand 11, single buffered']
    #allocation15 [shape = 's32[1]{0}', space=sflag, size = 0x4, scoped, tag = 'scoped memory for _lambda_.1']
    #allocation16 [shape = 'u8[1024]{0}', space=vmem, size = 0x400, scoped, tag = 'output window, operand 0, single buffered']
    %17 = vsyncpa [#allocation3], 0
    %18 = vsyncpa [#allocation6], 0
    %19 = vsyncpa [#allocation9], 0
    %20 = vsyncpa [#allocation12], 0
    %21 = vsyncpa [#allocation15], 0
    %22 = vsyncpa [#allocation4], 0
    // Predicated region
    $region2: #{_lambda_.1} parent=1 // pred_check
      _
    $region3: #{_lambda_.1} parent=1 // pred_check_branch
      %24 = sbr.rel (0) target = $region5
    $region4: #{_lambda_.1} parent=1 // pred_region
      _
    $region5: #{_lambda_.1} parent=1 // pred_fallthru
      _
    // Predicated region
    $region6: #{_lambda_.1} parent=1 // pred_check
      _
    $region7: #{_lambda_.1} parent=1 // pred_check_branch
      %26 = sbr.rel (0) target = $region9
    $region8: #{_lambda_.1} parent=1 // pred_region
      _
    $region9: #{_lambda_.1} parent=1 // pred_fallthru
      _
    // Predicated region
    $region10: #{_lambda_.1} parent=1 // pred_check
      _
    $region11: #{_lambda_.1} parent=1 // pred_check_branch
      %28 = sbr.rel (0) target = $region13
    $region12: #{_lambda_.1} parent=1 // pred_region
      %s30 = ssub.s32 16, 16
      %31 = vsyncadd [#allocation3], %s30
      %s33 = sshll.u32 [#allocation2], 4
      %s34 = int_to_ptr.vmem [resolvable:$true] %s33
      %36 = dma.hbm_to_vmem [thread:$0]  %s2, 16, %s34, [#allocation3]
    $region13: #{_lambda_.1} parent=1 // pred_fallthru
      _
    // Predicated region
    $region14: #{_lambda_.1} parent=1 // pred_check
      _
    $region15: #{_lambda_.1} parent=1 // pred_check_branch
      %38 = sbr.rel (0) target = $region17
    $region16: #{_lambda_.1} parent=1 // pred_region
      %s40 = ssub.s32 16, 16
      %41 = vsyncadd [#allocation6], %s40
      %s43 = sshll.u32 [#allocation5], 4
      %s44 = int_to_ptr.vmem [resolvable:$true] %s43
      %46 = dma.hbm_to_vmem [thread:$0]  %s3, 16, %s44, [#allocation6]
    $region17: #{_lambda_.1} parent=1 // pred_fallthru
      _
    // Predicated region
    $region18: #{_lambda_.1} parent=1 // pred_check
      _
    $region19: #{_lambda_.1} parent=1 // pred_check_branch
      %48 = sbr.rel (0) target = $region21
    $region20: #{_lambda_.1} parent=1 // pred_region
      %s50 = ssub.s32 384, 384
      %51 = vsyncadd [#allocation6], %s50
      %s52 = sshll.u32 [#allocation7], 4
      %s53 = int_to_ptr.vmem [resolvable:$true] %s52
      %58 = dma.hbm_to_vmem [thread:$0]  %s4, 384, %s53, [#allocation6], 128, 128, 8
    $region21: #{_lambda_.1} parent=1 // pred_fallthru
      _
    // Predicated region
    $region22: #{_lambda_.1} parent=1 // pred_check
      _
    $region23: #{_lambda_.1} parent=1 // pred_check_branch
      %60 = sbr.rel (0) target = $region25
    $region24: #{_lambda_.1} parent=1 // pred_region
      %s62 = ssub.s32 16, 16
      %63 = vsyncadd [#allocation9], %s62
      %s65 = sshll.u32 [#allocation8], 4
      %s66 = int_to_ptr.vmem [resolvable:$true] %s65
      %68 = dma.hbm_to_vmem [thread:$0]  %s5, 16, %s66, [#allocation9]
    $region25: #{_lambda_.1} parent=1 // pred_fallthru
      _
    // Predicated region
    $region26: #{_lambda_.1} parent=1 // pred_check
      _
    $region27: #{_lambda_.1} parent=1 // pred_check_branch
      %70 = sbr.rel (0) target = $region29
    $region28: #{_lambda_.1} parent=1 // pred_region
      %s72 = ssub.s32 16, 16
      %73 = vsyncadd [#allocation9], %s72
      %s75 = sshll.u32 [#allocation10], 4
      %s76 = int_to_ptr.vmem [resolvable:$true] %s75
      %78 = dma.hbm_to_vmem [thread:$0]  %s6, 16, %s76, [#allocation9]
    $region29: #{_lambda_.1} parent=1 // pred_fallthru
      _
    // Predicated region
    $region30: #{_lambda_.1} parent=1 // pred_check
      _
    $region31: #{_lambda_.1} parent=1 // pred_check_branch
      %80 = sbr.rel (0) target = $region33
    $region32: #{_lambda_.1} parent=1 // pred_region
      %s82 = ssub.s32 256, 256
      %83 = vsyncadd [#allocation12], %s82
      %s84 = sshll.u32 [#allocation11], 4
      %s85 = int_to_ptr.vmem [resolvable:$true] %s84
      %90 = dma.hbm_to_vmem [thread:$0]  %s7, 256, %s85, [#allocation12], 128, 128, 8
    $region33: #{_lambda_.1} parent=1 // pred_fallthru
      _
    // Predicated region
    $region34: #{_lambda_.1} parent=1 // pred_check
      _
    $region35: #{_lambda_.1} parent=1 // pred_check_branch
      %92 = sbr.rel (0) target = $region37
    $region36: #{_lambda_.1} parent=1 // pred_region
      _
    $region37: #{_lambda_.1} parent=1 // pred_fallthru
      _
    // Predicated region
    $region38: #{_lambda_.1} parent=1 // pred_check
      _
    $region39: #{_lambda_.1} parent=1 // pred_check_branch
      %94 = sbr.rel (0) target = $region41
    $region40: #{_lambda_.1} parent=1 // pred_region
      %s96 = ssub.s32 16, 16
      %97 = vsyncadd [#allocation12], %s96
      %s99 = sshll.u32 [#allocation13], 4
      %s100 = int_to_ptr.vmem [resolvable:$true] %s99
      %102 = dma.hbm_to_vmem [thread:$0]  %s9, 16, %s100, [#allocation12]
    $region41: #{_lambda_.1} parent=1 // pred_fallthru
      _
    // Predicated region
    $region42: #{_lambda_.1} parent=1 // pred_check
      _
    $region43: #{_lambda_.1} parent=1 // pred_check_branch
      %104 = sbr.rel (0) target = $region45
    $region44: #{_lambda_.1} parent=1 // pred_region
      _
    $region45: #{_lambda_.1} parent=1 // pred_fallthru
      _
    // Predicated region
    $region46: #{_lambda_.1} parent=1 // pred_check
      _
    $region47: #{_lambda_.1} parent=1 // pred_check_branch
      %106 = sbr.rel (0) target = $region49
    $region48: #{_lambda_.1} parent=1 // pred_region
      %s108 = ssub.s32 16, 16
      %109 = vsyncadd [#allocation15], %s108
      %s111 = sshll.u32 [#allocation14], 4
      %s112 = int_to_ptr.vmem [resolvable:$true] %s111
      %114 = dma.hbm_to_vmem [thread:$0]  %s11, 16, %s112, [#allocation15]
    $region49: #{_lambda_.1} parent=1 // pred_fallthru
      _
    // Predicated region
    $region50: #{_lambda_.1} parent=1 // pred_check
      _
    $region51: #{_lambda_.1} parent=1 // pred_check_branch
      %116 = sbr.rel (0) target = $region53
    $region52: #{_lambda_.1} parent=1 // pred_region
      %117 = dma.done [#allocation3], 16
    $region53: #{_lambda_.1} parent=1 // pred_fallthru
      _
    // Predicated region
    $region54: #{_lambda_.1} parent=1 // pred_check
      _
    $region55: #{_lambda_.1} parent=1 // pred_check_branch
      %119 = sbr.rel (0) target = $region57
    $region56: #{_lambda_.1} parent=1 // pred_region
      %120 = dma.done [#allocation6], 16
    $region57: #{_lambda_.1} parent=1 // pred_fallthru
      _
    // Predicated region
    $region58: #{_lambda_.1} parent=1 // pred_check
      _
    $region59: #{_lambda_.1} parent=1 // pred_check_branch
      %122 = sbr.rel (0) target = $region61
    $region60: #{_lambda_.1} parent=1 // pred_region
      %123 = dma.done [#allocation6], 384
    $region61: #{_lambda_.1} parent=1 // pred_fallthru
      _
    // Predicated region
    $region62: #{_lambda_.1} parent=1 // pred_check
      _
    $region63: #{_lambda_.1} parent=1 // pred_check_branch
      %125 = sbr.rel (0) target = $region65
    $region64: #{_lambda_.1} parent=1 // pred_region
      %126 = dma.done [#allocation9], 16
    $region65: #{_lambda_.1} parent=1 // pred_fallthru
      _
    // Predicated region
    $region66: #{_lambda_.1} parent=1 // pred_check
      _
    $region67: #{_lambda_.1} parent=1 // pred_check_branch
      %128 = sbr.rel (0) target = $region69
    $region68: #{_lambda_.1} parent=1 // pred_region
      %129 = dma.done [#allocation9], 16
    $region69: #{_lambda_.1} parent=1 // pred_fallthru
      _
    // Predicated region
    $region70: #{_lambda_.1} parent=1 // pred_check
      _
    $region71: #{_lambda_.1} parent=1 // pred_check_branch
      %131 = sbr.rel (0) target = $region73
    $region72: #{_lambda_.1} parent=1 // pred_region
      %132 = dma.done [#allocation12], 256
    $region73: #{_lambda_.1} parent=1 // pred_fallthru
      _
    // Predicated region
    $region74: #{_lambda_.1} parent=1 // pred_check
      _
    $region75: #{_lambda_.1} parent=1 // pred_check_branch
      %134 = sbr.rel (0) target = $region77
    $region76: #{_lambda_.1} parent=1 // pred_region
      %135 = dma.done [#allocation12], 16
    $region77: #{_lambda_.1} parent=1 // pred_fallthru
      _
    // Predicated region
    $region78: #{_lambda_.1} parent=1 // pred_check
      _
    $region79: #{_lambda_.1} parent=1 // pred_check_branch
      %137 = sbr.rel (0) target = $region81
    $region80: #{_lambda_.1} parent=1 // pred_region
      %138 = dma.done [#allocation15], 16
    $region81: #{_lambda_.1} parent=1 // pred_fallthru
      _
    %v139 = vld [vmem:[%s0] sm:$0xff]
    %v140 = vld [vmem:[%s0 + $0x8] sm:$0xff]
    %v141 = vld [vmem:[%s0 + $0x10] sm:$0xff]
    %v142 = vld [vmem:[%s0 + $0x18] sm:$0xff]
    %v143 = vld [vmem:[%s1] sm:$0x7]
    %v144 = vld [vmem:[#allocation2] sm:$0x1]
    %v145 = vld [vmem:[#allocation5] sm:$0x1]
    %vm150 = vcmask 1040384
    %v151 = vrot.slane %v139, 7
    %v152 = vrot.slane %v140, 7
    %v153 = vsel %vm150, %v151, %v152
    %v154 = vrot.slane %v141, 7
    %v155 = vrot.slane %v142, 7
    %v156 = vsel %vm150, %v154, %v155
    %v161 = vsel %vm150, 0.0, %v151
    %v162 = vsel %vm150, 0.0, %v154
    %vm163 = vcmask 1046528
    %v164 = vrot.slane %v139, 1
    %v165 = vrot.slane %v140, 1
    %v166 = vsel %vm163, %v164, %v165
    %v167 = vrot.slane %v141, 1
    %v168 = vrot.slane %v142, 1
    %v169 = vsel %vm163, %v167, %v168
    %v172 = vsel %vm163, %v165, 0.0
    %v173 = vsel %vm163, %v168, 0.0
    %174 = vrot.lane.b32.xlu0 %v139, 1
    %v175 = vpop.permute.xlu0 %174
    %176 = vrot.lane.b32.xlu0 %v140, 1
    %v177 = vpop.permute.xlu0 %176
    %178 = vrot.lane.b32.xlu0 %v141, 1
    %v179 = vpop.permute.xlu0 %178
    %180 = vrot.lane.b32.xlu0 %v142, 1
    %v181 = vpop.permute.xlu0 %180
    %188 = vrot.lane.b32.xlu0 %v166, 2
    %v189 = vpop.permute.xlu0 %188
    %190 = vrot.lane.b32.xlu0 %v172, 2
    %v191 = vpop.permute.xlu0 %190
    %192 = vrot.lane.b32.xlu0 %v169, 2
    %v193 = vpop.permute.xlu0 %192
    %194 = vrot.lane.b32.xlu0 %v173, 2
    %v195 = vpop.permute.xlu0 %194
    %vm200 = vcmask 7168
    %v201 = vsel %vm200, %v161, %v175
    %v202 = vsel %vm200, %v153, %v177
    %v203 = vsel %vm200, %v162, %v179
    %v204 = vsel %vm200, %v156, %v181
    %vm205 = vcmask 15360
    %v206 = vsel %vm205, %v201, %v189
    %v207 = vsel %vm205, %v202, %v191
    %v208 = vsel %vm205, %v203, %v193
    %v209 = vsel %vm205, %v204, %v195
    %vm210 = vcmask 23552
    %v212 = vsel %vm210, %v206, 0
    %v215 = vsel %vm210, %v207, 0
    %v218 = vsel %vm210, %v208, 0
    %v221 = vsel %vm210, %v209, 0
    %vm223 = vcmask 1042432
    %v225 = vsel %vm223, %v143, 0
    %227 = vmatprep.subr.mxu0 0.0
    %228 = vmatpush1.msra.mxu0 %v225
    %229 = vmatprep.subr.mxu0 0.0
    %230 = vmatpush1.msra.mxu0 0.0
    %231 = vmatprep.subr.mxu0 0.0
    %232 = vmatpush1.msra.mxu0 0.0
    %233 = vmatprep.subr.mxu0 0.0
    %234 = vmatpush1.msra.mxu0 0.0
    %235 = vmatprep.subr.mxu0 0.0
    %236 = vmatpush1.msra.mxu0 0.0
    %237 = vmatprep.subr.mxu0 0.0
    %238 = vmatpush1.msra.mxu0 0.0
    %239 = vmatprep.subr.mxu0 0.0
    %240 = vmatpush1.msra.mxu0 0.0
    %241 = vmatprep.subr.mxu0 0.0
    %242 = vmatpush1.msra.mxu0 0.0
    %243 = vmatprep.subr.mxu0 0.0
    %244 = vmatpush1.msra.mxu0 0.0
    %245 = vmatprep.subr.mxu0 0.0
    %246 = vmatpush1.msra.mxu0 0.0
    %247 = vmatprep.subr.mxu0 0.0
    %248 = vmatpush1.msra.mxu0 0.0
    %249 = vmatprep.subr.mxu0 0.0
    %250 = vmatpush1.msra.mxu0 0.0
    %251 = vmatprep.subr.mxu0 0.0
    %252 = vmatpush1.msra.mxu0 0.0
    %253 = vmatprep.subr.mxu0 0.0
    %254 = vmatpush1.msra.mxu0 0.0
    %255 = vmatprep.subr.mxu0 0.0
    %256 = vmatpush1.msra.mxu0 0.0
    %257 = vmatprep.subr.mxu0 0.0
    %258 = vmatpush1.msra.mxu0 0.0
    %259 = vmatprep.subr.mxu0 0.0
    %260 = vmatpush1.msra.mxu0 0.0
    %261 = vmatprep.subr.mxu0 0.0
    %262 = vmatpush1.msra.mxu0 0.0
    %263 = vmatprep.subr.mxu0 0.0
    %264 = vmatpush1.msra.mxu0 0.0
    %265 = vmatprep.subr.mxu0 0.0
    %266 = vmatpush1.msra.mxu0 0.0
    %267 = vmatprep.subr.mxu0 0.0
    %268 = vmatpush1.msra.mxu0 0.0
    %269 = vmatprep.subr.mxu0 0.0
    %270 = vmatpush1.msra.mxu0 0.0
    %271 = vmatprep.subr.mxu0 0.0
    %272 = vmatpush1.msra.mxu0 0.0
    %273 = vmatprep.subr.mxu0 0.0
    %274 = vmatpush1.msra.mxu0 0.0
    %275 = vmatprep.subr.mxu0 0.0
    %276 = vmatpush1.msra.mxu0 0.0
    %277 = vmatprep.subr.mxu0 0.0
    %278 = vmatpush1.msra.mxu0 0.0
    %279 = vmatprep.subr.mxu0 0.0
    %280 = vmatpush1.msra.mxu0 0.0
    %281 = vmatprep.subr.mxu0 0.0
    %282 = vmatpush1.msra.mxu0 0.0
    %283 = vmatprep.subr.mxu0 0.0
    %284 = vmatpush1.msra.mxu0 0.0
    %285 = vmatprep.subr.mxu0 0.0
    %286 = vmatpush1.msra.mxu0 0.0
    %287 = vmatprep.subr.mxu0 0.0
    %288 = vmatpush1.msra.mxu0 0.0
    %289 = vmatprep.subr.mxu0 0.0
    %290 = vmatpush1.msra.mxu0 0.0
    %291 = vmatprep.mubr.f32.mxu0 0.0
    %292 = vmatmul.mubr.f32.gmra.mrb[0].mxu0 %v212
    %v293 = vpop.f32.mrb[0].mxu0
    %v294 = vadd.f32 0.0, %v293
    %v295 = vpop.f32.mrb[0].mxu0
    %296 = vmatprep.mubr.f32.mxu0 0.0
    %297 = vmatmul.mubr.f32.gmra.mrb[0].mxu0 %v215
    %v298 = vpop.f32.mrb[0].mxu0
    %v299 = vadd.f32 0.0, %v298
    %v300 = vpop.f32.mrb[0].mxu0
    %301 = vmatprep.mubr.f32.mxu0 0.0
    %302 = vmatmul.mubr.f32.gmra.mrb[0].mxu0 %v218
    %v303 = vpop.f32.mrb[0].mxu0
    %v304 = vadd.f32 0.0, %v303
    %v305 = vpop.f32.mrb[0].mxu0
    %306 = vmatprep.mubr.f32.mxu0 0.0
    %307 = vmatmul.mubr.f32.gmra.mrb[0].mxu0 %v221
    %v308 = vpop.f32.mrb[0].mxu0
    %v309 = vadd.f32 0.0, %v308
    %v310 = vpop.f32.mrb[0].mxu0
    %311 = vdwg.mxu0
    %v313 = vlaneseq
    %v314 = vshrl.u32 %v313, 7
    %v315 = vsub.s32 0, %v314
    %v316 = vrot.slane %v144, %v315
    %v318 = vmul.f32 %v294, %v316
    %v319 = vmul.f32 %v299, %v316
    %v320 = vmul.f32 %v304, %v316
    %v321 = vmul.f32 %v309, %v316
    %v323 = vlaneseq
    %v324 = vshrl.u32 %v323, 7
    %v325 = vsub.s32 0, %v324
    %v326 = vrot.slane %v145, %v325
    %v328 = vadd.f32 %v318, %v326
    %v329 = vadd.f32 %v319, %v326
    %v330 = vadd.f32 %v320, %v326
    %v331 = vadd.f32 %v321, %v326
    %v332 = vmax.f32 %v328, 0.0
    %v333 = vmax.f32 %v329, 0.0
    %v334 = vmax.f32 %v330, 0.0
    %v335 = vmax.f32 %v331, 0.0
    %v340 = vcombine.high %v332, %v332
    %v342 = vunpack.c.l.s4 1983009808
    %v343 = vunpack.c.0.s8 %v342
    %v344 = vlaneseq
    %v345 = vshrl.u32 %v344, 7
    %v346 = vsub.s32 %v343, %v345
    %v347 = vrot.slane %v332, %v346
    %v349 = vunpack.c.l.s4 1983009808
    %v350 = vunpack.c.0.s8 %v349
    %v351 = vlaneseq
    %v352 = vshrl.u32 %v351, 7
    %v353 = vsub.s32 %v350, %v352
    %v354 = vrot.slane %v340, %v353
    %v355 = vcombine.high %v347, %v347
    %v356 = vcombine.high %v354, %v354
    %v357 = vcombine.high %v333, %v333
    %v359 = vunpack.c.l.s4 1983009808
    %v360 = vunpack.c.0.s8 %v359
    %v361 = vlaneseq
    %v362 = vshrl.u32 %v361, 7
    %v363 = vsub.s32 %v360, %v362
    %v364 = vrot.slane %v333, %v363
    %v366 = vunpack.c.l.s4 1983009808
    %v367 = vunpack.c.0.s8 %v366
    %v368 = vlaneseq
    %v369 = vshrl.u32 %v368, 7
    %v370 = vsub.s32 %v367, %v369
    %v371 = vrot.slane %v357, %v370
    %v372 = vcombine.high %v364, %v364
    %v373 = vcombine.high %v371, %v371
    %v374 = vcombine.high %v334, %v334
    %v376 = vunpack.c.l.s4 1983009808
    %v377 = vunpack.c.0.s8 %v376
    %v378 = vlaneseq
    %v379 = vshrl.u32 %v378, 7
    %v380 = vsub.s32 %v377, %v379
    %v381 = vrot.slane %v334, %v380
    %v383 = vunpack.c.l.s4 1983009808
    %v384 = vunpack.c.0.s8 %v383
    %v385 = vlaneseq
    %v386 = vshrl.u32 %v385, 7
    %v387 = vsub.s32 %v384, %v386
    %v388 = vrot.slane %v374, %v387
    %v389 = vcombine.high %v381, %v381
    %v390 = vcombine.high %v388, %v388
    %v391 = vcombine.high %v335, %v335
    %v393 = vunpack.c.l.s4 1983009808
    %v394 = vunpack.c.0.s8 %v393
    %v395 = vlaneseq
    %v396 = vshrl.u32 %v395, 7
    %v397 = vsub.s32 %v394, %v396
    %v398 = vrot.slane %v335, %v397
    %v400 = vunpack.c.l.s4 1983009808
    %v401 = vunpack.c.0.s8 %v400
    %v402 = vlaneseq
    %v403 = vshrl.u32 %v402, 7
    %v404 = vsub.s32 %v401, %v403
    %v405 = vrot.slane %v391, %v404
    %v406 = vcombine.high %v398, %v398
    %v407 = vcombine.high %v405, %v405
    %vm424 = vcmask 58368
    %v425 = vsel %vm424, %v347, -inf
    %v426 = vrot.slane %v425, 4
    %v427 = vmax.f32 %v425, %v426
    %v428 = vrot.slane %v427, 2
    %v429 = vmax.f32 %v427, %v428
    %v430 = vrot.slane %v429, 1
    %v431 = vmax.f32 %v429, %v430
    %v432 = vsel %vm424, %v355, -inf
    %v433 = vrot.slane %v432, 4
    %v434 = vmax.f32 %v432, %v433
    %v435 = vrot.slane %v434, 2
    %v436 = vmax.f32 %v434, %v435
    %v437 = vrot.slane %v436, 1
    %v438 = vmax.f32 %v436, %v437
    %v439 = vsel %vm424, %v354, -inf
    %v440 = vrot.slane %v439, 4
    %v441 = vmax.f32 %v439, %v440
    %v442 = vrot.slane %v441, 2
    %v443 = vmax.f32 %v441, %v442
    %v444 = vrot.slane %v443, 1
    %v445 = vmax.f32 %v443, %v444
    %v446 = vsel %vm424, %v356, -inf
    %v447 = vrot.slane %v446, 4
    %v448 = vmax.f32 %v446, %v447
    %v449 = vrot.slane %v448, 2
    %v450 = vmax.f32 %v448, %v449
    %v451 = vrot.slane %v450, 1
    %v452 = vmax.f32 %v450, %v451
    %v453 = vsel %vm424, %v364, -inf
    %v454 = vrot.slane %v453, 4
    %v455 = vmax.f32 %v453, %v454
    %v456 = vrot.slane %v455, 2
    %v457 = vmax.f32 %v455, %v456
    %v458 = vrot.slane %v457, 1
    %v459 = vmax.f32 %v457, %v458
    %v460 = vsel %vm424, %v372, -inf
    %v461 = vrot.slane %v460, 4
    %v462 = vmax.f32 %v460, %v461
    %v463 = vrot.slane %v462, 2
    %v464 = vmax.f32 %v462, %v463
    %v465 = vrot.slane %v464, 1
    %v466 = vmax.f32 %v464, %v465
    %v467 = vsel %vm424, %v371, -inf
    %v468 = vrot.slane %v467, 4
    %v469 = vmax.f32 %v467, %v468
    %v470 = vrot.slane %v469, 2
    %v471 = vmax.f32 %v469, %v470
    %v472 = vrot.slane %v471, 1
    %v473 = vmax.f32 %v471, %v472
    %v474 = vsel %vm424, %v373, -inf
    %v475 = vrot.slane %v474, 4
    %v476 = vmax.f32 %v474, %v475
    %v477 = vrot.slane %v476, 2
    %v478 = vmax.f32 %v476, %v477
    %v479 = vrot.slane %v478, 1
    %v480 = vmax.f32 %v478, %v479
    %v481 = vsel %vm424, %v381, -inf
    %v482 = vrot.slane %v481, 4
    %v483 = vmax.f32 %v481, %v482
    %v484 = vrot.slane %v483, 2
    %v485 = vmax.f32 %v483, %v484
    %v486 = vrot.slane %v485, 1
    %v487 = vmax.f32 %v485, %v486
    %v488 = vsel %vm424, %v389, -inf
    %v489 = vrot.slane %v488, 4
    %v490 = vmax.f32 %v488, %v489
    %v491 = vrot.slane %v490, 2
    %v492 = vmax.f32 %v490, %v491
    %v493 = vrot.slane %v492, 1
    %v494 = vmax.f32 %v492, %v493
    %v495 = vsel %vm424, %v388, -inf
    %v496 = vrot.slane %v495, 4
    %v497 = vmax.f32 %v495, %v496
    %v498 = vrot.slane %v497, 2
    %v499 = vmax.f32 %v497, %v498
    %v500 = vrot.slane %v499, 1
    %v501 = vmax.f32 %v499, %v500
    %v502 = vsel %vm424, %v390, -inf
    %v503 = vrot.slane %v502, 4
    %v504 = vmax.f32 %v502, %v503
    %v505 = vrot.slane %v504, 2
    %v506 = vmax.f32 %v504, %v505
    %v507 = vrot.slane %v506, 1
    %v508 = vmax.f32 %v506, %v507
    %v509 = vsel %vm424, %v398, -inf
    %v510 = vrot.slane %v509, 4
    %v511 = vmax.f32 %v509, %v510
    %v512 = vrot.slane %v511, 2
    %v513 = vmax.f32 %v511, %v512
    %v514 = vrot.slane %v513, 1
    %v515 = vmax.f32 %v513, %v514
    %v516 = vsel %vm424, %v406, -inf
    %v517 = vrot.slane %v516, 4
    %v518 = vmax.f32 %v516, %v517
    %v519 = vrot.slane %v518, 2
    %v520 = vmax.f32 %v518, %v519
    %v521 = vrot.slane %v520, 1
    %v522 = vmax.f32 %v520, %v521
    %v523 = vsel %vm424, %v405, -inf
    %v524 = vrot.slane %v523, 4
    %v525 = vmax.f32 %v523, %v524
    %v526 = vrot.slane %v525, 2
    %v527 = vmax.f32 %v525, %v526
    %v528 = vrot.slane %v527, 1
    %v529 = vmax.f32 %v527, %v528
    %v530 = vsel %vm424, %v407, -inf
    %v531 = vrot.slane %v530, 4
    %v532 = vmax.f32 %v530, %v531
    %v533 = vrot.slane %v532, 2
    %v534 = vmax.f32 %v532, %v533
    %v535 = vrot.slane %v534, 1
    %v536 = vmax.f32 %v534, %v535
    %v537 = vld [vmem:[#allocation7] sm:$0xff]
    %v538 = vld [vmem:[#allocation7 + $0x8] sm:$0xff]
    %v539 = vld [vmem:[#allocation7 + $0x10] sm:$0xff]
    %v540 = vld [vmem:[#allocation8] sm:$0x1]
    %v541 = vld [vmem:[#allocation10] sm:$0x1]
    %vm556 = vcmask 1042434
    %v557 = vsel %vm556, %v438, %v431
    %vm558 = vcmask 1043459
    %v559 = vsel %vm558, %v445, %v557
    %vm560 = vcmask 1044484
    %v561 = vsel %vm560, %v452, %v559
    %vm562 = vcmask 1045509
    %v563 = vsel %vm562, %v459, %v561
    %vm564 = vcmask 1046534
    %v565 = vsel %vm564, %v466, %v563
    %vm566 = vcmask 1047559
    %v567 = vsel %vm566, %v473, %v565
    %v568 = vsel %vm556, %v494, %v487
    %v569 = vsel %vm558, %v501, %v568
    %v570 = vsel %vm560, %v508, %v569
    %v571 = vsel %vm562, %v515, %v570
    %v572 = vsel %vm564, %v522, %v571
    %v573 = vsel %vm566, %v529, %v572
    %v576 = vsel %vm150, 0.0, %v567
    %v577 = vsel %vm150, 0.0, %v573
    %vm580 = vcmask 1041409
    %v581 = vsel %vm580, %v445, %v438
    %v582 = vsel %vm556, %v452, %v581
    %v583 = vsel %vm558, %v459, %v582
    %v584 = vsel %vm560, %v466, %v583
    %v585 = vsel %vm562, %v473, %v584
    %v586 = vsel %vm564, %v480, %v585
    %v587 = vsel %vm580, %v501, %v494
    %v588 = vsel %vm556, %v508, %v587
    %v589 = vsel %vm558, %v515, %v588
    %v590 = vsel %vm560, %v522, %v589
    %v591 = vsel %vm562, %v529, %v590
    %v592 = vsel %vm564, %v536, %v591
    %v595 = vsel %vm163, %v586, 0.0
    %v596 = vsel %vm163, %v592, 0.0
    %v597 = vsel %vm580, %v438, %v431
    %v598 = vsel %vm556, %v445, %v597
    %v599 = vsel %vm558, %v452, %v598
    %v600 = vsel %vm560, %v459, %v599
    %v601 = vsel %vm562, %v466, %v600
    %v602 = vsel %vm564, %v473, %v601
    %v603 = vsel %vm566, %v480, %v602
    %v604 = vsel %vm580, %v494, %v487
    %v605 = vsel %vm556, %v501, %v604
    %v606 = vsel %vm558, %v508, %v605
    %v607 = vsel %vm560, %v515, %v606
    %v608 = vsel %vm562, %v522, %v607
    %v609 = vsel %vm564, %v529, %v608
    %v610 = vsel %vm566, %v536, %v609
    %611 = vrot.lane.b32.xlu0 %v603, 8
    %v612 = vpop.permute.xlu0 %611
    %613 = vrot.lane.b32.xlu0 %v610, 8
    %v614 = vpop.permute.xlu0 %613
    %619 = vrot.lane.b32.xlu0 %v595, 16
    %v620 = vpop.permute.xlu0 %619
    %621 = vrot.lane.b32.xlu0 %v596, 16
    %v622 = vpop.permute.xlu0 %621
    %vm625 = vcmask 64512
    %v626 = vsel %vm625, %v576, %v612
    %v627 = vsel %vm625, %v577, %v614
    %vm628 = vcmask 130048
    %v629 = vsel %vm628, %v626, %v620
    %v630 = vsel %vm628, %v627, %v622
    %vm631 = vcmask 195584
    %v633 = vsel %vm631, %v629, 0
    %v636 = vsel %vm631, %v630, 0
    %638 = vmatprep.subr.mxu0 0.0
    %639 = vmatpush1.msra.mxu0 %v537
    %640 = vmatprep.subr.mxu0 0.0
    %641 = vmatpush1.msra.mxu0 %v538
    %642 = vmatprep.subr.mxu0 0.0
    %643 = vmatpush1.msra.mxu0 %v539
    %644 = vmatprep.subr.mxu0 0.0
    %645 = vmatpush1.msra.mxu0 0.0
    %646 = vmatprep.subr.mxu0 0.0
    %647 = vmatpush1.msra.mxu0 0.0
    %648 = vmatprep.subr.mxu0 0.0
    %649 = vmatpush1.msra.mxu0 0.0
    %650 = vmatprep.subr.mxu0 0.0
    %651 = vmatpush1.msra.mxu0 0.0
    %652 = vmatprep.subr.mxu0 0.0
    %653 = vmatpush1.msra.mxu0 0.0
    %654 = vmatprep.subr.mxu0 0.0
    %655 = vmatpush1.msra.mxu0 0.0
    %656 = vmatprep.subr.mxu0 0.0
    %657 = vmatpush1.msra.mxu0 0.0
    %658 = vmatprep.subr.mxu0 0.0
    %659 = vmatpush1.msra.mxu0 0.0
    %660 = vmatprep.subr.mxu0 0.0
    %661 = vmatpush1.msra.mxu0 0.0
    %662 = vmatprep.subr.mxu0 0.0
    %663 = vmatpush1.msra.mxu0 0.0
    %664 = vmatprep.subr.mxu0 0.0
    %665 = vmatpush1.msra.mxu0 0.0
    %666 = vmatprep.subr.mxu0 0.0
    %667 = vmatpush1.msra.mxu0 0.0
    %668 = vmatprep.subr.mxu0 0.0
    %669 = vmatpush1.msra.mxu0 0.0
    %670 = vmatprep.subr.mxu0 0.0
    %671 = vmatpush1.msra.mxu0 0.0
    %672 = vmatprep.subr.mxu0 0.0
    %673 = vmatpush1.msra.mxu0 0.0
    %674 = vmatprep.subr.mxu0 0.0
    %675 = vmatpush1.msra.mxu0 0.0
    %676 = vmatprep.subr.mxu0 0.0
    %677 = vmatpush1.msra.mxu0 0.0
    %678 = vmatprep.subr.mxu0 0.0
    %679 = vmatpush1.msra.mxu0 0.0
    %680 = vmatprep.subr.mxu0 0.0
    %681 = vmatpush1.msra.mxu0 0.0
    %682 = vmatprep.subr.mxu0 0.0
    %683 = vmatpush1.msra.mxu0 0.0
    %684 = vmatprep.subr.mxu0 0.0
    %685 = vmatpush1.msra.mxu0 0.0
    %686 = vmatprep.subr.mxu0 0.0
    %687 = vmatpush1.msra.mxu0 0.0
    %688 = vmatprep.subr.mxu0 0.0
    %689 = vmatpush1.msra.mxu0 0.0
    %690 = vmatprep.subr.mxu0 0.0
    %691 = vmatpush1.msra.mxu0 0.0
    %692 = vmatprep.subr.mxu0 0.0
    %693 = vmatpush1.msra.mxu0 0.0
    %694 = vmatprep.subr.mxu0 0.0
    %695 = vmatpush1.msra.mxu0 0.0
    %696 = vmatprep.subr.mxu0 0.0
    %697 = vmatpush1.msra.mxu0 0.0
    %698 = vmatprep.subr.mxu0 0.0
    %699 = vmatpush1.msra.mxu0 0.0
    %700 = vmatprep.subr.mxu0 0.0
    %701 = vmatpush1.msra.mxu0 0.0
    %702 = vmatprep.mubr.f32.mxu0 0.0
    %703 = vmatmul.mubr.f32.gmra.mrb[0].mxu0 %v633
    %v704 = vpop.f32.mrb[0].mxu0
    %v705 = vadd.f32 0.0, %v704
    %v706 = vpop.f32.mrb[0].mxu0
    %707 = vmatprep.mubr.f32.mxu0 0.0
    %708 = vmatmul.mubr.f32.gmra.mrb[0].mxu0 %v636
    %v709 = vpop.f32.mrb[0].mxu0
    %v710 = vadd.f32 0.0, %v709
    %v711 = vpop.f32.mrb[0].mxu0
    %712 = vdwg.mxu0
    %v714 = vlaneseq
    %v715 = vshrl.u32 %v714, 7
    %v716 = vsub.s32 0, %v715
    %v717 = vrot.slane %v540, %v716
    %v719 = vmul.f32 %v705, %v717
    %v720 = vmul.f32 %v710, %v717
    %v722 = vlaneseq
    %v723 = vshrl.u32 %v722, 7
    %v724 = vsub.s32 0, %v723
    %v725 = vrot.slane %v541, %v724
    %v727 = vadd.f32 %v719, %v725
    %v728 = vadd.f32 %v720, %v725
    %v729 = vmax.f32 %v727, 0.0
    %v730 = vmax.f32 %v728, 0.0
    %v733 = vcombine.high %v729, %v729
    %v735 = vunpack.c.l.s4 1983009808
    %v736 = vunpack.c.0.s8 %v735
    %v737 = vlaneseq
    %v738 = vshrl.u32 %v737, 7
    %v739 = vsub.s32 %v736, %v738
    %v740 = vrot.slane %v729, %v739
    %v742 = vunpack.c.l.s4 1983009808
    %v743 = vunpack.c.0.s8 %v742
    %v744 = vlaneseq
    %v745 = vshrl.u32 %v744, 7
    %v746 = vsub.s32 %v743, %v745
    %v747 = vrot.slane %v733, %v746
    %v748 = vcombine.high %v740, %v740
    %v749 = vcombine.high %v747, %v747
    %v750 = vcombine.high %v730, %v730
    %v752 = vunpack.c.l.s4 1983009808
    %v753 = vunpack.c.0.s8 %v752
    %v754 = vlaneseq
    %v755 = vshrl.u32 %v754, 7
    %v756 = vsub.s32 %v753, %v755
    %v757 = vrot.slane %v730, %v756
    %v759 = vunpack.c.l.s4 1983009808
    %v760 = vunpack.c.0.s8 %v759
    %v761 = vlaneseq
    %v762 = vshrl.u32 %v761, 7
    %v763 = vsub.s32 %v760, %v762
    %v764 = vrot.slane %v750, %v763
    %v765 = vcombine.high %v757, %v757
    %v766 = vcombine.high %v764, %v764
    %vm775 = vcmask 123904
    %v776 = vsel %vm775, %v740, -inf
    %v777 = vrot.slane %v776, 4
    %v778 = vmax.f32 %v776, %v777
    %v779 = vrot.slane %v778, 2
    %v780 = vmax.f32 %v778, %v779
    %v781 = vrot.slane %v780, 1
    %v782 = vmax.f32 %v780, %v781
    %v783 = vsel %vm775, %v748, -inf
    %v784 = vrot.slane %v783, 4
    %v785 = vmax.f32 %v783, %v784
    %v786 = vrot.slane %v785, 2
    %v787 = vmax.f32 %v785, %v786
    %v788 = vrot.slane %v787, 1
    %v789 = vmax.f32 %v787, %v788
    %v790 = vsel %vm775, %v747, -inf
    %v791 = vrot.slane %v790, 4
    %v792 = vmax.f32 %v790, %v791
    %v793 = vrot.slane %v792, 2
    %v794 = vmax.f32 %v792, %v793
    %v795 = vrot.slane %v794, 1
    %v796 = vmax.f32 %v794, %v795
    %v797 = vsel %vm775, %v749, -inf
    %v798 = vrot.slane %v797, 4
    %v799 = vmax.f32 %v797, %v798
    %v800 = vrot.slane %v799, 2
    %v801 = vmax.f32 %v799, %v800
    %v802 = vrot.slane %v801, 1
    %v803 = vmax.f32 %v801, %v802
    %v804 = vsel %vm775, %v757, -inf
    %v805 = vrot.slane %v804, 4
    %v806 = vmax.f32 %v804, %v805
    %v807 = vrot.slane %v806, 2
    %v808 = vmax.f32 %v806, %v807
    %v809 = vrot.slane %v808, 1
    %v810 = vmax.f32 %v808, %v809
    %v811 = vsel %vm775, %v765, -inf
    %v812 = vrot.slane %v811, 4
    %v813 = vmax.f32 %v811, %v812
    %v814 = vrot.slane %v813, 2
    %v815 = vmax.f32 %v813, %v814
    %v816 = vrot.slane %v815, 1
    %v817 = vmax.f32 %v815, %v816
    %v818 = vsel %vm775, %v764, -inf
    %v819 = vrot.slane %v818, 4
    %v820 = vmax.f32 %v818, %v819
    %v821 = vrot.slane %v820, 2
    %v822 = vmax.f32 %v820, %v821
    %v823 = vrot.slane %v822, 1
    %v824 = vmax.f32 %v822, %v823
    %v825 = vsel %vm775, %v766, -inf
    %v826 = vrot.slane %v825, 4
    %v827 = vmax.f32 %v825, %v826
    %v828 = vrot.slane %v827, 2
    %v829 = vmax.f32 %v827, %v828
    %v830 = vrot.slane %v829, 1
    %v831 = vmax.f32 %v829, %v830
    %v832 = vld [vmem:[#allocation11] sm:$0xff]
    %v833 = vld [vmem:[#allocation11 + $0x8] sm:$0xff]
    %v834 = vld [vmem:[#allocation13] sm:$0x1]
    %v836 = vlaneseq
    %v837 = vshrl.u32 %v836, 7
    %v838 = vsub.s32 0, %v837
    %v839 = vrot.slane %v834, %v838
    %v849 = vsel %vm580, %v789, %v782
    %v850 = vsel %vm556, %v796, %v849
    %v851 = vsel %vm558, %v803, %v850
    %v852 = vsel %vm560, %v810, %v851
    %v853 = vsel %vm562, %v817, %v852
    %v854 = vsel %vm564, %v824, %v853
    %v855 = vsel %vm566, %v831, %v854
    %v856 = vsel %vm628, %v855, 0
    %858 = vmatprep.subr.mxu0 0.0
    %859 = vmatpush1.msra.mxu0 %v832
    %860 = vmatprep.subr.mxu0 0.0
    %861 = vmatpush1.msra.mxu0 %v833
    %862 = vmatprep.subr.mxu0 0.0
    %863 = vmatpush1.msra.mxu0 0.0
    %864 = vmatprep.subr.mxu0 0.0
    %865 = vmatpush1.msra.mxu0 0.0
    %866 = vmatprep.subr.mxu0 0.0
    %867 = vmatpush1.msra.mxu0 0.0
    %868 = vmatprep.subr.mxu0 0.0
    %869 = vmatpush1.msra.mxu0 0.0
    %870 = vmatprep.subr.mxu0 0.0
    %871 = vmatpush1.msra.mxu0 0.0
    %872 = vmatprep.subr.mxu0 0.0
    %873 = vmatpush1.msra.mxu0 0.0
    %874 = vmatprep.subr.mxu0 0.0
    %875 = vmatpush1.msra.mxu0 0.0
    %876 = vmatprep.subr.mxu0 0.0
    %877 = vmatpush1.msra.mxu0 0.0
    %878 = vmatprep.subr.mxu0 0.0
    %879 = vmatpush1.msra.mxu0 0.0
    %880 = vmatprep.subr.mxu0 0.0
    %881 = vmatpush1.msra.mxu0 0.0
    %882 = vmatprep.subr.mxu0 0.0
    %883 = vmatpush1.msra.mxu0 0.0
    %884 = vmatprep.subr.mxu0 0.0
    %885 = vmatpush1.msra.mxu0 0.0
    %886 = vmatprep.subr.mxu0 0.0
    %887 = vmatpush1.msra.mxu0 0.0
    %888 = vmatprep.subr.mxu0 0.0
    %889 = vmatpush1.msra.mxu0 0.0
    %890 = vmatprep.subr.mxu0 0.0
    %891 = vmatpush1.msra.mxu0 0.0
    %892 = vmatprep.subr.mxu0 0.0
    %893 = vmatpush1.msra.mxu0 0.0
    %894 = vmatprep.subr.mxu0 0.0
    %895 = vmatpush1.msra.mxu0 0.0
    %896 = vmatprep.subr.mxu0 0.0
    %897 = vmatpush1.msra.mxu0 0.0
    %898 = vmatprep.subr.mxu0 0.0
    %899 = vmatpush1.msra.mxu0 0.0
    %900 = vmatprep.subr.mxu0 0.0
    %901 = vmatpush1.msra.mxu0 0.0
    %902 = vmatprep.subr.mxu0 0.0
    %903 = vmatpush1.msra.mxu0 0.0
    %904 = vmatprep.subr.mxu0 0.0
    %905 = vmatpush1.msra.mxu0 0.0
    %906 = vmatprep.subr.mxu0 0.0
    %907 = vmatpush1.msra.mxu0 0.0
    %908 = vmatprep.subr.mxu0 0.0
    %909 = vmatpush1.msra.mxu0 0.0
    %910 = vmatprep.subr.mxu0 0.0
    %911 = vmatpush1.msra.mxu0 0.0
    %912 = vmatprep.subr.mxu0 0.0
    %913 = vmatpush1.msra.mxu0 0.0
    %914 = vmatprep.subr.mxu0 0.0
    %915 = vmatpush1.msra.mxu0 0.0
    %916 = vmatprep.subr.mxu0 0.0
    %917 = vmatpush1.msra.mxu0 0.0
    %918 = vmatprep.subr.mxu0 0.0
    %919 = vmatpush1.msra.mxu0 0.0
    %920 = vmatprep.subr.mxu0 0.0
    %921 = vmatpush1.msra.mxu0 0.0
    %922 = vmatprep.mubr.f32.mxu0 0.0
    %923 = vmatmul.mubr.f32.gmra.mrb[0].mxu0 %v856
    %v924 = vpop.f32.mrb[0].mxu0
    %v925 = vadd.f32 %v839, %v924
    %v926 = vpop.f32.mrb[0].mxu0
    %927 = vdwg.mxu0
    %v929 = vcombine.high %v925, %v925
    %v931 = vld [vmem:[%s8] sm:$0xff]
    %v932 = vld [vmem:[%s8 + $0x8] sm:$0xff]
    %v933 = vld [vmem:[%s8 + $0x10] sm:$0xff]
    %v934 = vld [vmem:[%s8 + $0x18] sm:$0xff]
    %vm935 = vcmask 261120
    %v937 = vsel %vm935, 0.0, 0
    %939 = vmatprep.subr.mxu0 0.0
    %940 = vmatpush1.msra.mxu0 %v931
    %941 = vmatprep.subr.mxu0 0.0
    %942 = vmatpush1.msra.mxu0 %v932
    %943 = vmatprep.subr.mxu0 0.0
    %944 = vmatpush1.msra.mxu0 %v933
    %945 = vmatprep.subr.mxu0 0.0
    %946 = vmatpush1.msra.mxu0 %v934
    %947 = vmatprep.subr.mxu0 0.0
    %948 = vmatpush1.msra.mxu0 0.0
    %949 = vmatprep.subr.mxu0 0.0
    %950 = vmatpush1.msra.mxu0 0.0
    %951 = vmatprep.subr.mxu0 0.0
    %952 = vmatpush1.msra.mxu0 0.0
    %953 = vmatprep.subr.mxu0 0.0
    %954 = vmatpush1.msra.mxu0 0.0
    %955 = vmatprep.subr.mxu0 0.0
    %956 = vmatpush1.msra.mxu0 0.0
    %957 = vmatprep.subr.mxu0 0.0
    %958 = vmatpush1.msra.mxu0 0.0
    %959 = vmatprep.subr.mxu0 0.0
    %960 = vmatpush1.msra.mxu0 0.0
    %961 = vmatprep.subr.mxu0 0.0
    %962 = vmatpush1.msra.mxu0 0.0
    %963 = vmatprep.subr.mxu0 0.0
    %964 = vmatpush1.msra.mxu0 0.0
    %965 = vmatprep.subr.mxu0 0.0
    %966 = vmatpush1.msra.mxu0 0.0
    %967 = vmatprep.subr.mxu0 0.0
    %968 = vmatpush1.msra.mxu0 0.0
    %969 = vmatprep.subr.mxu0 0.0
    %970 = vmatpush1.msra.mxu0 0.0
    %971 = vmatprep.subr.mxu0 0.0
    %972 = vmatpush1.msra.mxu0 0.0
    %973 = vmatprep.subr.mxu0 0.0
    %974 = vmatpush1.msra.mxu0 0.0
    %975 = vmatprep.subr.mxu0 0.0
    %976 = vmatpush1.msra.mxu0 0.0
    %977 = vmatprep.subr.mxu0 0.0
    %978 = vmatpush1.msra.mxu0 0.0
    %979 = vmatprep.subr.mxu0 0.0
    %980 = vmatpush1.msra.mxu0 0.0
    %981 = vmatprep.subr.mxu0 0.0
    %982 = vmatpush1.msra.mxu0 0.0
    %983 = vmatprep.subr.mxu0 0.0
    %984 = vmatpush1.msra.mxu0 0.0
    %985 = vmatprep.subr.mxu0 0.0
    %986 = vmatpush1.msra.mxu0 0.0
    %987 = vmatprep.subr.mxu0 0.0
    %988 = vmatpush1.msra.mxu0 0.0
    %989 = vmatprep.subr.mxu0 0.0
    %990 = vmatpush1.msra.mxu0 0.0
    %991 = vmatprep.subr.mxu0 0.0
    %992 = vmatpush1.msra.mxu0 0.0
    %993 = vmatprep.subr.mxu0 0.0
    %994 = vmatpush1.msra.mxu0 0.0
    %995 = vmatprep.subr.mxu0 0.0
    %996 = vmatpush1.msra.mxu0 0.0
    %997 = vmatprep.subr.mxu0 0.0
    %998 = vmatpush1.msra.mxu0 0.0
    %999 = vmatprep.subr.mxu0 0.0
    %1000 = vmatpush1.msra.mxu0 0.0
    %1001 = vmatprep.subr.mxu0 0.0
    %1002 = vmatpush1.msra.mxu0 0.0
    %1003 = vmatprep.mubr.f32.mxu0 0.0
    %1004 = vmatmul.mubr.f32.gmra.mrb[0].mxu0 %v937
    %v1005 = vpop.f32.mrb[0].mxu0
    %v1006 = vadd.f32 0.0, %v1005
    %v1007 = vpop.f32.mrb[0].mxu0
    %1008 = vdwg.mxu0
    %v1010 = vrot.slane %v1006, 1
    %v1013 = vadd.f32 %v925, %v1006
    %v1014 = vadd.f32 %v929, %v1010
    %v1015 = vxor.u32 %v1013, 2147483648
    %v1016 = vxor.u32 %v1014, 2147483648
    %v1017 = vmul.f32 %v1015, 1.442695
    %v1018 = vpow.pop %v1017
    %v1019 = vmul.f32 %v1016, 1.442695
    %v1020 = vpow.pop %v1019
    %v1021 = vadd.f32 %v1018, 1.0
    %v1022 = vadd.f32 %v1020, 1.0
    %v1023 = vrcp.pop %v1021
    %v1024 = vmul.f32 1.0, %v1023
    %v1025 = vrcp.pop %v1022
    %v1026 = vmul.f32 1.0, %v1025
    %v1027 = vtanh.pop %v1013
    %v1028 = vtanh.pop %v1014
    %v1029 = vmul.f32 %v1024, 0.0
    %v1030 = vmul.f32 %v1026, 0.0
    %1033 = vrot.lane.b32.xlu0 %v1027, 64
    %v1034 = vpop.permute.xlu0 %1033
    %1035 = vrot.lane.b32.xlu0 %v1028, 64
    %v1036 = vpop.permute.xlu0 %1035
    %v1039 = vmul.f32 %v1024, %v1034
    %v1040 = vmul.f32 %v1026, %v1036
    %1043 = vrot.lane.b32.xlu0 %v1039, 32
    %v1044 = vpop.permute.xlu0 %1043
    %1045 = vrot.lane.b32.xlu0 %v1040, 32
    %v1046 = vpop.permute.xlu0 %1045
    %v1049 = vadd.f32 %v1029, %v1044
    %v1050 = vadd.f32 %v1030, %v1046
    %v1051 = vtanh.pop %v1049
    %v1052 = vtanh.pop %v1050
    %1055 = vrot.lane.b32.xlu0 %v1051, 64
    %v1056 = vpop.permute.xlu0 %1055
    %1057 = vrot.lane.b32.xlu0 %v1052, 64
    %v1058 = vpop.permute.xlu0 %1057
    %v1061 = vmul.f32 %v1024, %v1056
    %v1062 = vmul.f32 %v1026, %v1058
    %v1065 = vlaneseq
    %v1066 = vshrl.u32 %v1065, 7
    %v1067 = vsub.s32 0, %v1066
    %v1068 = vrot.slane %v1061, %v1067
    %v1069 = vlaneseq
    %v1070 = vshrl.u32 %v1069, 7
    %v1071 = vsub.s32 0, %v1070
    %v1072 = vrot.slane %v1062, %v1071
    %v1073 = vsel %vm580, %v1072, %v1068
    %1074 = vrot.lane.b32.xlu0 %v1073, 32
    %v1075 = vpop.permute.xlu0 %1074
    %v1076 = vsel %vm935, %v1075, 0
    %1078 = vmatprep.subr.mxu0 0.0
    %1079 = vmatpush1.msra.mxu0 %v931
    %1080 = vmatprep.subr.mxu0 0.0
    %1081 = vmatpush1.msra.mxu0 %v932
    %1082 = vmatprep.subr.mxu0 0.0
    %1083 = vmatpush1.msra.mxu0 %v933
    %1084 = vmatprep.subr.mxu0 0.0
    %1085 = vmatpush1.msra.mxu0 %v934
    %1086 = vmatprep.subr.mxu0 0.0
    %1087 = vmatpush1.msra.mxu0 0.0
    %1088 = vmatprep.subr.mxu0 0.0
    %1089 = vmatpush1.msra.mxu0 0.0
    %1090 = vmatprep.subr.mxu0 0.0
    %1091 = vmatpush1.msra.mxu0 0.0
    %1092 = vmatprep.subr.mxu0 0.0
    %1093 = vmatpush1.msra.mxu0 0.0
    %1094 = vmatprep.subr.mxu0 0.0
    %1095 = vmatpush1.msra.mxu0 0.0
    %1096 = vmatprep.subr.mxu0 0.0
    %1097 = vmatpush1.msra.mxu0 0.0
    %1098 = vmatprep.subr.mxu0 0.0
    %1099 = vmatpush1.msra.mxu0 0.0
    %1100 = vmatprep.subr.mxu0 0.0
    %1101 = vmatpush1.msra.mxu0 0.0
    %1102 = vmatprep.subr.mxu0 0.0
    %1103 = vmatpush1.msra.mxu0 0.0
    %1104 = vmatprep.subr.mxu0 0.0
    %1105 = vmatpush1.msra.mxu0 0.0
    %1106 = vmatprep.subr.mxu0 0.0
    %1107 = vmatpush1.msra.mxu0 0.0
    %1108 = vmatprep.subr.mxu0 0.0
    %1109 = vmatpush1.msra.mxu0 0.0
    %1110 = vmatprep.subr.mxu0 0.0
    %1111 = vmatpush1.msra.mxu0 0.0
    %1112 = vmatprep.subr.mxu0 0.0
    %1113 = vmatpush1.msra.mxu0 0.0
    %1114 = vmatprep.subr.mxu0 0.0
    %1115 = vmatpush1.msra.mxu0 0.0
    %1116 = vmatprep.subr.mxu0 0.0
    %1117 = vmatpush1.msra.mxu0 0.0
    %1118 = vmatprep.subr.mxu0 0.0
    %1119 = vmatpush1.msra.mxu0 0.0
    %1120 = vmatprep.subr.mxu0 0.0
    %1121 = vmatpush1.msra.mxu0 0.0
    %1122 = vmatprep.subr.mxu0 0.0
    %1123 = vmatpush1.msra.mxu0 0.0
    %1124 = vmatprep.subr.mxu0 0.0
    %1125 = vmatpush1.msra.mxu0 0.0
    %1126 = vmatprep.subr.mxu0 0.0
    %1127 = vmatpush1.msra.mxu0 0.0
    %1128 = vmatprep.subr.mxu0 0.0
    %1129 = vmatpush1.msra.mxu0 0.0
    %1130 = vmatprep.subr.mxu0 0.0
    %1131 = vmatpush1.msra.mxu0 0.0
    %1132 = vmatprep.subr.mxu0 0.0
    %1133 = vmatpush1.msra.mxu0 0.0
    %1134 = vmatprep.subr.mxu0 0.0
    %1135 = vmatpush1.msra.mxu0 0.0
    %1136 = vmatprep.subr.mxu0 0.0
    %1137 = vmatpush1.msra.mxu0 0.0
    %1138 = vmatprep.subr.mxu0 0.0
    %1139 = vmatpush1.msra.mxu0 0.0
    %1140 = vmatprep.subr.mxu0 0.0
    %1141 = vmatpush1.msra.mxu0 0.0
    %1142 = vmatprep.mubr.f32.mxu0 0.0
    %1143 = vmatmul.mubr.f32.gmra.mrb[0].mxu0 %v1076
    %v1144 = vpop.f32.mrb[0].mxu0
    %v1145 = vadd.f32 0.0, %v1144
    %v1146 = vpop.f32.mrb[0].mxu0
    %1147 = vdwg.mxu0
    %v1149 = vrot.slane %v1145, 7
    %v1152 = vadd.f32 %v925, %v1149
    %v1153 = vadd.f32 %v929, %v1145
    %v1154 = vxor.u32 %v1152, 2147483648
    %v1155 = vxor.u32 %v1153, 2147483648
    %v1156 = vmul.f32 %v1154, 1.442695
    %v1157 = vpow.pop %v1156
    %v1158 = vmul.f32 %v1155, 1.442695
    %v1159 = vpow.pop %v1158
    %v1160 = vadd.f32 %v1157, 1.0
    %v1161 = vadd.f32 %v1159, 1.0
    %v1162 = vrcp.pop %v1160
    %v1163 = vmul.f32 1.0, %v1162
    %v1164 = vrcp.pop %v1161
    %v1165 = vmul.f32 1.0, %v1164
    %v1166 = vtanh.pop %v1152
    %v1167 = vtanh.pop %v1153
    %v1170 = vrot.slane %v1049, 7
    %v1171 = vrot.slane %v1050, 7
    %v1174 = vmul.f32 %v1163, %v1170
    %v1175 = vmul.f32 %v1165, %v1171
    %1178 = vrot.lane.b32.xlu0 %v1166, 64
    %v1179 = vpop.permute.xlu0 %1178
    %1180 = vrot.lane.b32.xlu0 %v1167, 64
    %v1181 = vpop.permute.xlu0 %1180
    %v1184 = vmul.f32 %v1163, %v1179
    %v1185 = vmul.f32 %v1165, %v1181
    %1188 = vrot.lane.b32.xlu0 %v1184, 32
    %v1189 = vpop.permute.xlu0 %1188
    %1190 = vrot.lane.b32.xlu0 %v1185, 32
    %v1191 = vpop.permute.xlu0 %1190
    %v1194 = vadd.f32 %v1174, %v1189
    %v1195 = vadd.f32 %v1175, %v1191
    %v1196 = vtanh.pop %v1194
    %v1197 = vtanh.pop %v1195
    %1200 = vrot.lane.b32.xlu0 %v1196, 64
    %v1201 = vpop.permute.xlu0 %1200
    %1202 = vrot.lane.b32.xlu0 %v1197, 64
    %v1203 = vpop.permute.xlu0 %1202
    %v1206 = vmul.f32 %v1163, %v1201
    %v1207 = vmul.f32 %v1165, %v1203
    %v1210 = vlaneseq
    %v1211 = vshrl.u32 %v1210, 7
    %v1212 = vsub.s32 1, %v1211
    %v1213 = vrot.slane %v1206, %v1212
    %v1214 = vlaneseq
    %v1215 = vshrl.u32 %v1214, 7
    %v1216 = vsub.s32 1, %v1215
    %v1217 = vrot.slane %v1207, %v1216
    %v1218 = vsel %vm580, %v1217, %v1213
    %1219 = vrot.lane.b32.xlu0 %v1218, 32
    %v1220 = vpop.permute.xlu0 %1219
    %v1221 = vsel %vm935, %v1220, 0
    %1223 = vmatprep.subr.mxu0 0.0
    %1224 = vmatpush1.msra.mxu0 %v931
    %1225 = vmatprep.subr.mxu0 0.0
    %1226 = vmatpush1.msra.mxu0 %v932
    %1227 = vmatprep.subr.mxu0 0.0
    %1228 = vmatpush1.msra.mxu0 %v933
    %1229 = vmatprep.subr.mxu0 0.0
    %1230 = vmatpush1.msra.mxu0 %v934
    %1231 = vmatprep.subr.mxu0 0.0
    %1232 = vmatpush1.msra.mxu0 0.0
    %1233 = vmatprep.subr.mxu0 0.0
    %1234 = vmatpush1.msra.mxu0 0.0
    %1235 = vmatprep.subr.mxu0 0.0
    %1236 = vmatpush1.msra.mxu0 0.0
    %1237 = vmatprep.subr.mxu0 0.0
    %1238 = vmatpush1.msra.mxu0 0.0
    %1239 = vmatprep.subr.mxu0 0.0
    %1240 = vmatpush1.msra.mxu0 0.0
    %1241 = vmatprep.subr.mxu0 0.0
    %1242 = vmatpush1.msra.mxu0 0.0
    %1243 = vmatprep.subr.mxu0 0.0
    %1244 = vmatpush1.msra.mxu0 0.0
    %1245 = vmatprep.subr.mxu0 0.0
    %1246 = vmatpush1.msra.mxu0 0.0
    %1247 = vmatprep.subr.mxu0 0.0
    %1248 = vmatpush1.msra.mxu0 0.0
    %1249 = vmatprep.subr.mxu0 0.0
    %1250 = vmatpush1.msra.mxu0 0.0
    %1251 = vmatprep.subr.mxu0 0.0
    %1252 = vmatpush1.msra.mxu0 0.0
    %1253 = vmatprep.subr.mxu0 0.0
    %1254 = vmatpush1.msra.mxu0 0.0
    %1255 = vmatprep.subr.mxu0 0.0
    %1256 = vmatpush1.msra.mxu0 0.0
    %1257 = vmatprep.subr.mxu0 0.0
    %1258 = vmatpush1.msra.mxu0 0.0
    %1259 = vmatprep.subr.mxu0 0.0
    %1260 = vmatpush1.msra.mxu0 0.0
    %1261 = vmatprep.subr.mxu0 0.0
    %1262 = vmatpush1.msra.mxu0 0.0
    %1263 = vmatprep.subr.mxu0 0.0
    %1264 = vmatpush1.msra.mxu0 0.0
    %1265 = vmatprep.subr.mxu0 0.0
    %1266 = vmatpush1.msra.mxu0 0.0
    %1267 = vmatprep.subr.mxu0 0.0
    %1268 = vmatpush1.msra.mxu0 0.0
    %1269 = vmatprep.subr.mxu0 0.0
    %1270 = vmatpush1.msra.mxu0 0.0
    %1271 = vmatprep.subr.mxu0 0.0
    %1272 = vmatpush1.msra.mxu0 0.0
    %1273 = vmatprep.subr.mxu0 0.0
    %1274 = vmatpush1.msra.mxu0 0.0
    %1275 = vmatprep.subr.mxu0 0.0
    %1276 = vmatpush1.msra.mxu0 0.0
    %1277 = vmatprep.subr.mxu0 0.0
    %1278 = vmatpush1.msra.mxu0 0.0
    %1279 = vmatprep.subr.mxu0 0.0
    %1280 = vmatpush1.msra.mxu0 0.0
    %1281 = vmatprep.subr.mxu0 0.0
    %1282 = vmatpush1.msra.mxu0 0.0
    %1283 = vmatprep.subr.mxu0 0.0
    %1284 = vmatpush1.msra.mxu0 0.0
    %1285 = vmatprep.subr.mxu0 0.0
    %1286 = vmatpush1.msra.mxu0 0.0
    %1287 = vmatprep.mubr.f32.mxu0 0.0
    %1288 = vmatmul.mubr.f32.gmra.mrb[0].mxu0 %v1221
    %v1289 = vpop.f32.mrb[0].mxu0
    %v1290 = vadd.f32 0.0, %v1289
    %v1291 = vpop.f32.mrb[0].mxu0
    %1292 = vdwg.mxu0
    %v1294 = vrot.slane %v1290, 6
    %v1295 = vrot.slane %v1290, 7
    %v1298 = vadd.f32 %v925, %v1294
    %v1299 = vadd.f32 %v929, %v1295
    %v1300 = vxor.u32 %v1298, 2147483648
    %v1301 = vxor.u32 %v1299, 2147483648
    %v1302 = vmul.f32 %v1300, 1.442695
    %v1303 = vpow.pop %v1302
    %v1304 = vmul.f32 %v1301, 1.442695
    %v1305 = vpow.pop %v1304
    %v1306 = vadd.f32 %v1303, 1.0
    %v1307 = vadd.f32 %v1305, 1.0
    %v1308 = vrcp.pop %v1306
    %v1309 = vmul.f32 1.0, %v1308
    %v1310 = vrcp.pop %v1307
    %v1311 = vmul.f32 1.0, %v1310
    %v1312 = vtanh.pop %v1298
    %v1313 = vtanh.pop %v1299
    %v1316 = vrot.slane %v1194, 7
    %v1317 = vrot.slane %v1195, 7
    %v1320 = vmul.f32 %v1309, %v1316
    %v1321 = vmul.f32 %v1311, %v1317
    %1324 = vrot.lane.b32.xlu0 %v1312, 64
    %v1325 = vpop.permute.xlu0 %1324
    %1326 = vrot.lane.b32.xlu0 %v1313, 64
    %v1327 = vpop.permute.xlu0 %1326
    %v1330 = vmul.f32 %v1309, %v1325
    %v1331 = vmul.f32 %v1311, %v1327
    %1334 = vrot.lane.b32.xlu0 %v1330, 32
    %v1335 = vpop.permute.xlu0 %1334
    %1336 = vrot.lane.b32.xlu0 %v1331, 32
    %v1337 = vpop.permute.xlu0 %1336
    %v1340 = vadd.f32 %v1320, %v1335
    %v1341 = vadd.f32 %v1321, %v1337
    %v1342 = vtanh.pop %v1340
    %v1343 = vtanh.pop %v1341
    %1346 = vrot.lane.b32.xlu0 %v1342, 64
    %v1347 = vpop.permute.xlu0 %1346
    %1348 = vrot.lane.b32.xlu0 %v1343, 64
    %v1349 = vpop.permute.xlu0 %1348
    %v1352 = vmul.f32 %v1309, %v1347
    %v1353 = vmul.f32 %v1311, %v1349
    %v1356 = vlaneseq
    %v1357 = vshrl.u32 %v1356, 7
    %v1358 = vsub.s32 2, %v1357
    %v1359 = vrot.slane %v1352, %v1358
    %v1360 = vlaneseq
    %v1361 = vshrl.u32 %v1360, 7
    %v1362 = vsub.s32 2, %v1361
    %v1363 = vrot.slane %v1353, %v1362
    %v1364 = vsel %vm580, %v1363, %v1359
    %1365 = vrot.lane.b32.xlu0 %v1364, 32
    %v1366 = vpop.permute.xlu0 %1365
    %v1367 = vsel %vm935, %v1366, 0
    %1369 = vmatprep.subr.mxu0 0.0
    %1370 = vmatpush1.msra.mxu0 %v931
    %1371 = vmatprep.subr.mxu0 0.0
    %1372 = vmatpush1.msra.mxu0 %v932
    %1373 = vmatprep.subr.mxu0 0.0
    %1374 = vmatpush1.msra.mxu0 %v933
    %1375 = vmatprep.subr.mxu0 0.0
    %1376 = vmatpush1.msra.mxu0 %v934
    %1377 = vmatprep.subr.mxu0 0.0
    %1378 = vmatpush1.msra.mxu0 0.0
    %1379 = vmatprep.subr.mxu0 0.0
    %1380 = vmatpush1.msra.mxu0 0.0
    %1381 = vmatprep.subr.mxu0 0.0
    %1382 = vmatpush1.msra.mxu0 0.0
    %1383 = vmatprep.subr.mxu0 0.0
    %1384 = vmatpush1.msra.mxu0 0.0
    %1385 = vmatprep.subr.mxu0 0.0
    %1386 = vmatpush1.msra.mxu0 0.0
    %1387 = vmatprep.subr.mxu0 0.0
    %1388 = vmatpush1.msra.mxu0 0.0
    %1389 = vmatprep.subr.mxu0 0.0
    %1390 = vmatpush1.msra.mxu0 0.0
    %1391 = vmatprep.subr.mxu0 0.0
    %1392 = vmatpush1.msra.mxu0 0.0
    %1393 = vmatprep.subr.mxu0 0.0
    %1394 = vmatpush1.msra.mxu0 0.0
    %1395 = vmatprep.subr.mxu0 0.0
    %1396 = vmatpush1.msra.mxu0 0.0
    %1397 = vmatprep.subr.mxu0 0.0
    %1398 = vmatpush1.msra.mxu0 0.0
    %1399 = vmatprep.subr.mxu0 0.0
    %1400 = vmatpush1.msra.mxu0 0.0
    %1401 = vmatprep.subr.mxu0 0.0
    %1402 = vmatpush1.msra.mxu0 0.0
    %1403 = vmatprep.subr.mxu0 0.0
    %1404 = vmatpush1.msra.mxu0 0.0
    %1405 = vmatprep.subr.mxu0 0.0
    %1406 = vmatpush1.msra.mxu0 0.0
    %1407 = vmatprep.subr.mxu0 0.0
    %1408 = vmatpush1.msra.mxu0 0.0
    %1409 = vmatprep.subr.mxu0 0.0
    %1410 = vmatpush1.msra.mxu0 0.0
    %1411 = vmatprep.subr.mxu0 0.0
    %1412 = vmatpush1.msra.mxu0 0.0
    %1413 = vmatprep.subr.mxu0 0.0
    %1414 = vmatpush1.msra.mxu0 0.0
    %1415 = vmatprep.subr.mxu0 0.0
    %1416 = vmatpush1.msra.mxu0 0.0
    %1417 = vmatprep.subr.mxu0 0.0
    %1418 = vmatpush1.msra.mxu0 0.0
    %1419 = vmatprep.subr.mxu0 0.0
    %1420 = vmatpush1.msra.mxu0 0.0
    %1421 = vmatprep.subr.mxu0 0.0
    %1422 = vmatpush1.msra.mxu0 0.0
    %1423 = vmatprep.subr.mxu0 0.0
    %1424 = vmatpush1.msra.mxu0 0.0
    %1425 = vmatprep.subr.mxu0 0.0
    %1426 = vmatpush1.msra.mxu0 0.0
    %1427 = vmatprep.subr.mxu0 0.0
    %1428 = vmatpush1.msra.mxu0 0.0
    %1429 = vmatprep.subr.mxu0 0.0
    %1430 = vmatpush1.msra.mxu0 0.0
    %1431 = vmatprep.subr.mxu0 0.0
    %1432 = vmatpush1.msra.mxu0 0.0
    %1433 = vmatprep.mubr.f32.mxu0 0.0
    %1434 = vmatmul.mubr.f32.gmra.mrb[0].mxu0 %v1367
    %v1435 = vpop.f32.mrb[0].mxu0
    %v1436 = vadd.f32 0.0, %v1435
    %v1437 = vpop.f32.mrb[0].mxu0
    %1438 = vdwg.mxu0
    %v1440 = vrot.slane %v1436, 5
    %v1441 = vrot.slane %v1436, 6
    %v1444 = vadd.f32 %v925, %v1440
    %v1445 = vadd.f32 %v929, %v1441
    %v1446 = vxor.u32 %v1444, 2147483648
    %v1447 = vxor.u32 %v1445, 2147483648
    %v1448 = vmul.f32 %v1446, 1.442695
    %v1449 = vpow.pop %v1448
    %v1450 = vmul.f32 %v1447, 1.442695
    %v1451 = vpow.pop %v1450
    %v1452 = vadd.f32 %v1449, 1.0
    %v1453 = vadd.f32 %v1451, 1.0
    %v1454 = vrcp.pop %v1452
    %v1455 = vmul.f32 1.0, %v1454
    %v1456 = vrcp.pop %v1453
    %v1457 = vmul.f32 1.0, %v1456
    %v1458 = vtanh.pop %v1444
    %v1459 = vtanh.pop %v1445
    %v1462 = vrot.slane %v1340, 7
    %v1463 = vrot.slane %v1341, 7
    %v1466 = vmul.f32 %v1455, %v1462
    %v1467 = vmul.f32 %v1457, %v1463
    %1470 = vrot.lane.b32.xlu0 %v1458, 64
    %v1471 = vpop.permute.xlu0 %1470
    %1472 = vrot.lane.b32.xlu0 %v1459, 64
    %v1473 = vpop.permute.xlu0 %1472
    %v1476 = vmul.f32 %v1455, %v1471
    %v1477 = vmul.f32 %v1457, %v1473
    %1480 = vrot.lane.b32.xlu0 %v1476, 32
    %v1481 = vpop.permute.xlu0 %1480
    %1482 = vrot.lane.b32.xlu0 %v1477, 32
    %v1483 = vpop.permute.xlu0 %1482
    %v1486 = vadd.f32 %v1466, %v1481
    %v1487 = vadd.f32 %v1467, %v1483
    %v1488 = vtanh.pop %v1486
    %v1489 = vtanh.pop %v1487
    %1492 = vrot.lane.b32.xlu0 %v1488, 64
    %v1493 = vpop.permute.xlu0 %1492
    %1494 = vrot.lane.b32.xlu0 %v1489, 64
    %v1495 = vpop.permute.xlu0 %1494
    %v1498 = vmul.f32 %v1455, %v1493
    %v1499 = vmul.f32 %v1457, %v1495
    %v1500 = vld [vmem:[%s10] sm:$0xff]
    %v1501 = vld [vmem:[%s10 + $0x8] sm:$0xff]
    %v1502 = vld [vmem:[%s10 + $0x10] sm:$0xff]
    %v1503 = vld [vmem:[%s10 + $0x18] sm:$0xff]
    %v1504 = vld [vmem:[#allocation14] sm:$0x1]
    %v1506 = vlaneseq
    %v1507 = vshrl.u32 %v1506, 7
    %v1508 = vsub.s32 0, %v1507
    %v1509 = vrot.slane %v1504, %v1508
    %v1513 = vlaneseq
    %v1514 = vshrl.u32 %v1513, 7
    %v1515 = vsub.s32 3, %v1514
    %v1516 = vrot.slane %v1498, %v1515
    %v1517 = vlaneseq
    %v1518 = vshrl.u32 %v1517, 7
    %v1519 = vsub.s32 3, %v1518
    %v1520 = vrot.slane %v1499, %v1519
    %v1521 = vsel %vm580, %v1520, %v1516
    %1522 = vrot.lane.b32.xlu0 %v1521, 32
    %v1523 = vpop.permute.xlu0 %1522
    %v1524 = vsel %vm935, %v1523, 0
    %1526 = vmatprep.subr.mxu0 0.0
    %1527 = vmatpush1.msra.mxu0 %v1500
    %1528 = vmatprep.subr.mxu0 0.0
    %1529 = vmatpush1.msra.mxu0 %v1501
    %1530 = vmatprep.subr.mxu0 0.0
    %1531 = vmatpush1.msra.mxu0 %v1502
    %1532 = vmatprep.subr.mxu0 0.0
    %1533 = vmatpush1.msra.mxu0 %v1503
    %1534 = vmatprep.subr.mxu0 0.0
    %1535 = vmatpush1.msra.mxu0 0.0
    %1536 = vmatprep.subr.mxu0 0.0
    %1537 = vmatpush1.msra.mxu0 0.0
    %1538 = vmatprep.subr.mxu0 0.0
    %1539 = vmatpush1.msra.mxu0 0.0
    %1540 = vmatprep.subr.mxu0 0.0
    %1541 = vmatpush1.msra.mxu0 0.0
    %1542 = vmatprep.subr.mxu0 0.0
    %1543 = vmatpush1.msra.mxu0 0.0
    %1544 = vmatprep.subr.mxu0 0.0
    %1545 = vmatpush1.msra.mxu0 0.0
    %1546 = vmatprep.subr.mxu0 0.0
    %1547 = vmatpush1.msra.mxu0 0.0
    %1548 = vmatprep.subr.mxu0 0.0
    %1549 = vmatpush1.msra.mxu0 0.0
    %1550 = vmatprep.subr.mxu0 0.0
    %1551 = vmatpush1.msra.mxu0 0.0
    %1552 = vmatprep.subr.mxu0 0.0
    %1553 = vmatpush1.msra.mxu0 0.0
    %1554 = vmatprep.subr.mxu0 0.0
    %1555 = vmatpush1.msra.mxu0 0.0
    %1556 = vmatprep.subr.mxu0 0.0
    %1557 = vmatpush1.msra.mxu0 0.0
    %1558 = vmatprep.subr.mxu0 0.0
    %1559 = vmatpush1.msra.mxu0 0.0
    %1560 = vmatprep.subr.mxu0 0.0
    %1561 = vmatpush1.msra.mxu0 0.0
    %1562 = vmatprep.subr.mxu0 0.0
    %1563 = vmatpush1.msra.mxu0 0.0
    %1564 = vmatprep.subr.mxu0 0.0
    %1565 = vmatpush1.msra.mxu0 0.0
    %1566 = vmatprep.subr.mxu0 0.0
    %1567 = vmatpush1.msra.mxu0 0.0
    %1568 = vmatprep.subr.mxu0 0.0
    %1569 = vmatpush1.msra.mxu0 0.0
    %1570 = vmatprep.subr.mxu0 0.0
    %1571 = vmatpush1.msra.mxu0 0.0
    %1572 = vmatprep.subr.mxu0 0.0
    %1573 = vmatpush1.msra.mxu0 0.0
    %1574 = vmatprep.subr.mxu0 0.0
    %1575 = vmatpush1.msra.mxu0 0.0
    %1576 = vmatprep.subr.mxu0 0.0
    %1577 = vmatpush1.msra.mxu0 0.0
    %1578 = vmatprep.subr.mxu0 0.0
    %1579 = vmatpush1.msra.mxu0 0.0
    %1580 = vmatprep.subr.mxu0 0.0
    %1581 = vmatpush1.msra.mxu0 0.0
    %1582 = vmatprep.subr.mxu0 0.0
    %1583 = vmatpush1.msra.mxu0 0.0
    %1584 = vmatprep.subr.mxu0 0.0
    %1585 = vmatpush1.msra.mxu0 0.0
    %1586 = vmatprep.subr.mxu0 0.0
    %1587 = vmatpush1.msra.mxu0 0.0
    %1588 = vmatprep.subr.mxu0 0.0
    %1589 = vmatpush1.msra.mxu0 0.0
    %1590 = vmatprep.mubr.f32.mxu0 0.0
    %1591 = vmatmul.mubr.f32.gmra.mrb[0].mxu0 %v1524
    %v1592 = vpop.f32.mrb[0].mxu0
    %v1593 = vadd.f32 %v1509, %v1592
    %v1594 = vpop.f32.mrb[0].mxu0
    %1595 = vdwg.mxu0
    %vm1596 = vcmask 33792
    %1597 = vst.msk [vmem:[#allocation16] sm:$0x3] %vm1596, %v1593
    // Predicated region
    $region82: #{_lambda_.1} parent=1 // pred_check
      _
    $region83: #{_lambda_.1} parent=1 // pred_check_branch
      %1599 = sbr.rel (0) target = $region85
    $region84: #{_lambda_.1} parent=1 // pred_region
      %s1601 = ssub.s32 32, 32
      %1602 = vsyncadd [#allocation4], %s1601
      %s1604 = sshll.u32 [#allocation16], 4
      %s1605 = int_to_ptr.vmem [resolvable:$true] %s1604
      %1607 = dma.vmem_to_hbm [thread:$0]  %s1605, 32, %s12, [#allocation4]
    $region85: #{_lambda_.1} parent=1 // pred_fallthru
      _
    // Predicated region
    $region86: #{_lambda_.1} parent=1 // pred_check
      _
    $region87: #{_lambda_.1} parent=1 // pred_check_branch
      %1609 = sbr.rel (0) target = $region89
    $region88: #{_lambda_.1} parent=1 // pred_region
      %1610 = dma.done [#allocation4], 32
    $region89: #{_lambda_.1} parent=1 // pred_fallthru
      _
    %1611 = vsyncpa [#allocation3], 1
    %1612 = vsyncpa [#allocation6], 1
    %1613 = vsyncpa [#allocation9], 1
    %1614 = vsyncpa [#allocation12], 1
    %1615 = vsyncpa [#allocation15], 1
    %1616 = vsyncpa [#allocation4], 1

</llo_original>
